<compile_context>
chip_gen: v7x
topology: tpu7x:2x2x1
jax: 0.10.0
libtpu: 0.0.40
codegen_flags: <defaults>
</compile_context>

<pallas_src>
import numpy as np
import jax
import jax.numpy as jnp
from jax.experimental import pallas as pl
from jax.experimental.pallas import tpu as pltpu


LANE = 128


# ----------------------------------------------------------------------------
# Parameter construction
# ----------------------------------------------------------------------------
def gaussian_params(scale):
    """(kernel2d [K,K], ka, kb, int_inv_scale) — used by the plain-JAX reference."""
    sigma = (1.0 / scale - 1.0) / 2.0
    kernel_size = 2 * round(sigma * 4) + 1
    ka = kernel_size // 2
    kb = ka - 1 if kernel_size % 2 == 0 else ka
    mean = (kernel_size - 1) / 2.0
    coords = np.arange(kernel_size, dtype=np.float32)
    g = np.exp(-((coords - mean) ** 2) / (2.0 * sigma ** 2))
    kernel2d = np.outer(g, g).astype(np.float32)
    kernel2d = kernel2d / kernel2d.sum()
    return kernel2d, ka, kb, int(1.0 / scale)


def banded_gaussian_matrices(scale, H, W, lane_pad=LANE):
    """Banded matrices folding zero-pad + separable blur + ::s subsample.

    out = A_h @ x @ A_w  with A_h: (Ho, H), A_w: (W, Wo_pad).
    Taps falling outside [0, H)/[0, W) are absent (== zero padding).
    A_w is zero-padded along its columns up to `lane_pad` when the true Wo is
    smaller, so output stores stay lane-dense; returns (A_h, A_w, true_Wo).
    """
    sigma = (1.0 / scale - 1.0) / 2.0
    kernel_size = 2 * round(sigma * 4) + 1
    ka = kernel_size // 2                      # kernel_size is odd -> kb == ka
    mean = (kernel_size - 1) / 2.0
    coords = np.arange(kernel_size, dtype=np.float64)
    g = np.exp(-((coords - mean) ** 2) / (2.0 * sigma ** 2))
    g = (g / g.sum()).astype(np.float32)       # normalized 1D (outer(g,g)==kernel2d)
    s = int(1.0 / scale)

    def band(n_in):
        sel = np.arange(0, n_in, s)            # indices kept by the subsample
        A = np.zeros((len(sel), n_in), np.float32)
        for r, y in enumerate(sel):
            for i in range(kernel_size):
                h = y + i - ka
                if 0 <= h < n_in:
                    A[r, h] = g[i]
        return A

    A_h = band(H)                              # (Ho, H)
    A_w = band(W).T.copy()                     # (W, Wo)
    Wo = A_w.shape[1]
    Wo_pad = lane_pad if Wo < lane_pad else Wo
    if Wo_pad != Wo:
        A_w = np.pad(A_w, ((0, 0), (0, Wo_pad - Wo)))
    return A_h, A_w, Wo


# ----------------------------------------------------------------------------
# VMEM / grid planning
# ----------------------------------------------------------------------------
def _vmem_capacity_bytes():
    try:
        return int(pltpu.get_tpu_info().vmem_capacity_bytes)
    except Exception:
        return 64 << 20                         # conservative (v7x per-TC VMEM)


def _num_tensorcores():
    """Best-effort TensorCore-per-chip count; 1 is a safe fallback."""
    objs = []
    try:
        objs.append(pltpu.get_tpu_info())
    except Exception:
        pass
    try:
        objs.append(jax.devices()[0])
    except Exception:
        pass
    for obj in objs:
        for attr in ("num_cores", "core_count", "num_tensorcores"):
            v = getattr(obj, attr, None)
            if isinstance(v, (int, np.integer)) and int(v) > 0:
                return int(v)
    return 1


def _footprint_bytes(cb, H, W, in_item, comp_item, out_item, out_dims):
    """Estimated per-step VMEM footprint: pipelined blocks + intermediates."""
    f = 2 * cb * H * W * in_item                       # double-buffered x block
    f += cb * H * W * comp_item                        # staged/reshaped plane block
    inter = 0
    for ho, wo_pad in out_dims:
        f += 2 * cb * ho * wo_pad * out_item           # double-buffered out block
        f += 2 * (ho * H + W * wo_pad) * comp_item     # A_h / A_w (double-buffered)
        inter = max(inter, cb * H * wo_pad * (4 + comp_item) + ho * wo_pad * 4)
    return f + inter


def _plan(N, H, W, in_item, comp_item, out_item, out_dims, max_planes=16):
    """Pick planes-per-step (cb) and an explicit vmem_limit_bytes."""
    cap = _vmem_capacity_bytes()
    ntc = _num_tensorcores()
    budget = max(4 << 20, cap // 3)

    candidates = [cb for cb in range(1, min(N, max_planes) + 1)
                  if N % cb == 0
                  and _footprint_bytes(cb, H, W, in_item, comp_item,
                                       out_item, out_dims) <= budget]
    if not candidates:
        candidates = [1]

    cb = candidates[-1]                                # largest that fits (1-TC chips)
    if ntc >= 2:
        want = 4 * ntc                                 # a few pipelined steps per TC
        good = [c for c in candidates if N // c >= want]
        fair = [c for c in candidates if N // c >= ntc]
        cb = (good or fair or candidates)[-1]

    fp = _footprint_bytes(cb, H, W, in_item, comp_item, out_item, out_dims)
    vmem_limit = int(min(cap - (2 << 20), max(2 * fp + (8 << 20), 32 << 20)))
    vmem_limit = max(vmem_limit, fp + (8 << 20))
    vmem_limit = int(min(vmem_limit, cap))
    return cb, vmem_limit


# ----------------------------------------------------------------------------
# Fused Pallas kernel: all scales, a block of (B*C) planes per grid step
# ----------------------------------------------------------------------------
def _make_pyramid_kernel(num_scales, compute_dtype, w_first):
    def kernel(*refs):
        x_ref = refs[0]
        # Hoist matrix loads out of any loops.
        mats = [(refs[1 + 2 * s][...], refs[2 + 2 * s][...])
                for s in range(num_scales)]
        out_refs = refs[1 + 2 * num_scales:]
        cb, H, W = x_ref.shape
        x = x_ref[...]                                  # (cb, H, W), native dtype

        if w_first:
            # Stage 1 (batched large-M MXU matmul): blur+subsample along W.
            x2d = x.reshape(cb * H, W)
            for s, (a_h, a_w) in enumerate(mats):
                wo_pad = a_w.shape[1]
                t = jnp.dot(x2d, a_w, preferred_element_type=jnp.float32)
                t = t.astype(compute_dtype).reshape(cb, H, wo_pad)
                # Stage 2: blur+subsample along H, per plane (small M, dense N).
                for n in range(cb):
                    y = jnp.dot(a_h, t[n], preferred_element_type=jnp.float32)
                    out_refs[s][n] = y.astype(out_refs[s].dtype)
        else:
            # H > W: reduce the larger spatial dim first (smaller intermediates).
            for s, (a_h, a_w) in enumerate(mats):
                for n in range(cb):
                    t = jnp.dot(a_h, x[n], preferred_element_type=jnp.float32)
                    t = t.astype(compute_dtype)
                    y = jnp.dot(t, a_w, preferred_element_type=jnp.float32)
                    out_refs[s][n] = y.astype(out_refs[s].dtype)
    return kernel


# ----------------------------------------------------------------------------
# ImagePyramide forward
# ----------------------------------------------------------------------------
def image_pyramide(x, scales):
    """x: (B, C, H, W) NCHW. Returns dict of 'prediction_<scale>'."""
    B, C, H, W = x.shape
    out = {}
    work = []  # unique non-unit scales, in order
    for sc in scales:
        key = "prediction_" + str(sc)
        if float(sc) == 1.0:
            out[key] = x
        elif all(k != key for k, _ in work):
            work.append((key, float(sc)))
    if not work:
        return out

    N = B * C
    xs = x.reshape(N, H, W)

    # bf16 inputs stay bf16 on the MXU; everything else uses the f32 path.
    compute_dtype = jnp.bfloat16 if x.dtype == jnp.bfloat16 else jnp.float32
    in_item = jnp.dtype(x.dtype).itemsize
    comp_item = jnp.dtype(compute_dtype).itemsize
    out_item = in_item

    mats = [banded_gaussian_matrices(sc, H, W) for _, sc in work]
    out_dims = [(a_h.shape[0], a_w.shape[1]) for a_h, a_w, _ in mats]
    true_wos = [wo for _, _, wo in mats]

    cb, vmem_limit = _plan(N, H, W, in_item, comp_item, out_item, out_dims)

    in_specs = [pl.BlockSpec((cb, H, W), lambda n: (n, 0, 0))]
    mat_args = []
    for a_h, a_w, _ in mats:
        in_specs.append(pl.BlockSpec(a_h.shape, lambda n: (0, 0)))
        in_specs.append(pl.BlockSpec(a_w.shape, lambda n: (0, 0)))
        mat_args += [jnp.asarray(a_h, dtype=compute_dtype),
                     jnp.asarray(a_w, dtype=compute_dtype)]

    out_shape = tuple(jax.ShapeDtypeStruct((N, ho, wp), x.dtype)
                      for ho, wp in out_dims)
    out_specs = tuple(pl.BlockSpec((cb, ho, wp), lambda n: (n, 0, 0))
                      for ho, wp in out_dims)

    results = pl.pallas_call(
        _make_pyramid_kernel(len(work), compute_dtype, w_first=(W >= H)),
        out_shape=out_shape,
        grid=(N // cb,),
        in_specs=in_specs,
        out_specs=out_specs,
        compiler_params=pltpu.CompilerParams(
            dimension_semantics=("parallel",),
            vmem_limit_bytes=vmem_limit),
    )(xs, *mat_args)

    if not isinstance(results, (tuple, list)):
        results = (results,)
    for (key, _), r, (ho, wp), wo in zip(work, results, out_dims, true_wos):
        out[key] = r[:, :, :wo].reshape(B, C, ho, wo)
    return out


# ----------------------------------------------------------------------------
# Plain-JAX reference (original pad -> K*K conv -> subsample) for sanity check
# ----------------------------------------------------------------------------
def image_pyramide_ref(x, scales):
    B, C, H, W = x.shape
    out = {}
    for scale in scales:
        key = "prediction_" + str(scale)
        if float(scale) == 1.0:
            out[key] = x
            continue
        kernel2d, ka, kb, s = gaussian_params(scale)
        K = kernel2d.shape[0]
        xp = jnp.pad(x.astype(jnp.float32), ((0, 0), (0, 0), (ka, kb), (ka, kb)))
        acc = jnp.zeros((B, C, H, W), jnp.float32)
        for i in range(K):
            for j in range(K):
                acc = acc + float(kernel2d[i, j]) * xp[:, :, i:i + H, j:j + W]
        out[key] = acc[:, :, ::s, ::s].astype(x.dtype)
    return out


if __name__ == "__main__":
    scales = (1.0, 0.5, 0.25)
    B, C, H, W = 2, 4, 16, 16

    key = jax.random.PRNGKey(0)
    x = jax.random.normal(key, (B, C, H, W), dtype=jnp.float32)

    # f32 path: must match the reference tightly.
    out = image_pyramide(x, scales)
    out = jax.tree_util.tree_map(jax.block_until_ready, out)

    ref = image_pyramide_ref(x, scales)
    for k in out:
        np.testing.assert_allclose(np.asarray(out[k]), np.asarray(ref[k]),
                                   rtol=1e-5, atol=1e-5)
        sc = float(k.split("_")[1])
        stride = 1 if sc == 1.0 else int(1.0 / sc)
        assert out[k].shape == (B, C, (H + stride - 1) // stride,
                                (W + stride - 1) // stride)

    # bf16 path: bf16 operands on the MXU, f32 accumulation (loose tolerance).
    xb = x.astype(jnp.bfloat16)
    outb = image_pyramide(xb, scales)
    outb = jax.tree_util.tree_map(jax.block_until_ready, outb)
    for k in outb:
        np.testing.assert_allclose(
            np.asarray(outb[k].astype(jnp.float32)),
            np.asarray(ref[k], dtype=np.float32),
            rtol=5e-2, atol=5e-2)

    print("KERNEL_OK")
</pallas_src>

<mosaic_0001>
module attributes {stable_mosaic.version = 11 : i64} {
  func.func @kernel(%arg0: i32, %arg1: memref<8x16x16xf32, #tpu.memory_space<vmem>>, %arg2: memref<8x16xf32, #tpu.memory_space<vmem>>, %arg3: memref<16x128xf32, #tpu.memory_space<vmem>>, %arg4: memref<4x16xf32, #tpu.memory_space<vmem>>, %arg5: memref<16x128xf32, #tpu.memory_space<vmem>>, %arg6: memref<8x8x128xf32, #tpu.memory_space<vmem>>, %arg7: memref<8x4x128xf32, #tpu.memory_space<vmem>>) attributes {dimension_semantics = [#tpu.dimension_semantics<parallel>], iteration_bounds = array<i64: 1>, scalar_prefetch = 0 : i64, scratch_operands = 0 : i64, tpu.core_type = #tpu.core_type<tc>, window_params = [{transform_indices = @transform_0, window_bounds = array<i64: 8, 16, 16>}, {pipeline_mode = #tpu.pipeline_mode<synchronous>, transform_indices = @transform_1, window_bounds = array<i64: 8, 16>}, {pipeline_mode = #tpu.pipeline_mode<synchronous>, transform_indices = @transform_2, window_bounds = array<i64: 16, 128>}, {pipeline_mode = #tpu.pipeline_mode<synchronous>, transform_indices = @transform_3, window_bounds = array<i64: 4, 16>}, {pipeline_mode = #tpu.pipeline_mode<synchronous>, transform_indices = @transform_4, window_bounds = array<i64: 16, 128>}, {transform_indices = @transform_5, window_bounds = array<i64: 8, 8, 128>}, {transform_indices = @transform_6, window_bounds = array<i64: 8, 4, 128>}]} {
    %c0 = arith.constant 0 : index
    %c0_0 = arith.constant 0 : index
    %0 = vector.load %arg2[%c0, %c0_0] : memref<8x16xf32, #tpu.memory_space<vmem>>, vector<8x16xf32>
    %c0_1 = arith.constant 0 : index
    %c0_2 = arith.constant 0 : index
    %1 = vector.load %arg3[%c0_1, %c0_2] : memref<16x128xf32, #tpu.memory_space<vmem>>, vector<16x128xf32>
    %c0_3 = arith.constant 0 : index
    %c0_4 = arith.constant 0 : index
    %2 = vector.load %arg4[%c0_3, %c0_4] : memref<4x16xf32, #tpu.memory_space<vmem>>, vector<4x16xf32>
    %c0_5 = arith.constant 0 : index
    %c0_6 = arith.constant 0 : index
    %3 = vector.load %arg5[%c0_5, %c0_6] : memref<16x128xf32, #tpu.memory_space<vmem>>, vector<16x128xf32>
    %c0_7 = arith.constant 0 : index
    %c0_8 = arith.constant 0 : index
    %c0_9 = arith.constant 0 : index
    %4 = vector.load %arg1[%c0_7, %c0_8, %c0_9] : memref<8x16x16xf32, #tpu.memory_space<vmem>>, vector<8x16x16xf32>
    %5 = vector.shape_cast %4 : vector<8x16x16xf32> to vector<128x16xf32>
    %cst = arith.constant dense<0.000000e+00> : vector<128x128xf32>
    %6 = tpu.matmul %5, %1, %cst {dimension_numbers = #tpu.dot_dimension_numbers<[1], [0], [0], [1], [0, 0, 1, 1], [], []>} : vector<128x16xf32>, vector<16x128xf32>, vector<128x128xf32> -> vector<128x128xf32>
    %7 = vector.shape_cast %6 : vector<128x128xf32> to vector<8x16x128xf32>
    %8 = vector.extract_strided_slice %7 {offsets = [0, 0, 0], sizes = [1, 16, 128], strides = [1, 1, 1]} : vector<8x16x128xf32> to vector<1x16x128xf32>
    %9 = vector.shape_cast %8 : vector<1x16x128xf32> to vector<16x128xf32>
    %cst_10 = arith.constant dense<0.000000e+00> : vector<8x128xf32>
    %10 = tpu.matmul %0, %9, %cst_10 {dimension_numbers = #tpu.dot_dimension_numbers<[1], [0], [0], [1], [0, 0, 1, 1], [], []>} : vector<8x16xf32>, vector<16x128xf32>, vector<8x128xf32> -> vector<8x128xf32>
    %c0_11 = arith.constant 0 : index
    %c0_12 = arith.constant 0 : index
    %c0_13 = arith.constant 0 : index
    %11 = vector.load %arg6[%c0_11, %c0_12, %c0_13] : memref<8x8x128xf32, #tpu.memory_space<vmem>>, vector<1x8x128xf32>
    %12 = vector.shape_cast %11 : vector<1x8x128xf32> to vector<8x128xf32>
    %13 = vector.shape_cast %10 : vector<8x128xf32> to vector<1x8x128xf32>
    tpu.vector_store %arg6[%c0_11, %c0_12, %c0_13], %13 {strides = array<i32>} : memref<8x8x128xf32, #tpu.memory_space<vmem>>, vector<1x8x128xf32>,
    %14 = vector.extract_strided_slice %7 {offsets = [1, 0, 0], sizes = [1, 16, 128], strides = [1, 1, 1]} : vector<8x16x128xf32> to vector<1x16x128xf32>
    %15 = vector.shape_cast %14 : vector<1x16x128xf32> to vector<16x128xf32>
    %cst_14 = arith.constant dense<0.000000e+00> : vector<8x128xf32>
    %16 = tpu.matmul %0, %15, %cst_14 {dimension_numbers = #tpu.dot_dimension_numbers<[1], [0], [0], [1], [0, 0, 1, 1], [], []>} : vector<8x16xf32>, vector<16x128xf32>, vector<8x128xf32> -> vector<8x128xf32>
    %c1 = arith.constant 1 : index
    %c0_15 = arith.constant 0 : index
    %c0_16 = arith.constant 0 : index
    %17 = vector.load %arg6[%c1, %c0_15, %c0_16] : memref<8x8x128xf32, #tpu.memory_space<vmem>>, vector<1x8x128xf32>
    %18 = vector.shape_cast %17 : vector<1x8x128xf32> to vector<8x128xf32>
    %19 = vector.shape_cast %16 : vector<8x128xf32> to vector<1x8x128xf32>
    tpu.vector_store %arg6[%c1, %c0_15, %c0_16], %19 {strides = array<i32>} : memref<8x8x128xf32, #tpu.memory_space<vmem>>, vector<1x8x128xf32>,
    %20 = vector.extract_strided_slice %7 {offsets = [2, 0, 0], sizes = [1, 16, 128], strides = [1, 1, 1]} : vector<8x16x128xf32> to vector<1x16x128xf32>
    %21 = vector.shape_cast %20 : vector<1x16x128xf32> to vector<16x128xf32>
    %cst_17 = arith.constant dense<0.000000e+00> : vector<8x128xf32>
    %22 = tpu.matmul %0, %21, %cst_17 {dimension_numbers = #tpu.dot_dimension_numbers<[1], [0], [0], [1], [0, 0, 1, 1], [], []>} : vector<8x16xf32>, vector<16x128xf32>, vector<8x128xf32> -> vector<8x128xf32>
    %c2 = arith.constant 2 : index
    %c0_18 = arith.constant 0 : index
    %c0_19 = arith.constant 0 : index
    %23 = vector.load %arg6[%c2, %c0_18, %c0_19] : memref<8x8x128xf32, #tpu.memory_space<vmem>>, vector<1x8x128xf32>
    %24 = vector.shape_cast %23 : vector<1x8x128xf32> to vector<8x128xf32>
    %25 = vector.shape_cast %22 : vector<8x128xf32> to vector<1x8x128xf32>
    tpu.vector_store %arg6[%c2, %c0_18, %c0_19], %25 {strides = array<i32>} : memref<8x8x128xf32, #tpu.memory_space<vmem>>, vector<1x8x128xf32>,
    %26 = vector.extract_strided_slice %7 {offsets = [3, 0, 0], sizes = [1, 16, 128], strides = [1, 1, 1]} : vector<8x16x128xf32> to vector<1x16x128xf32>
    %27 = vector.shape_cast %26 : vector<1x16x128xf32> to vector<16x128xf32>
    %cst_20 = arith.constant dense<0.000000e+00> : vector<8x128xf32>
    %28 = tpu.matmul %0, %27, %cst_20 {dimension_numbers = #tpu.dot_dimension_numbers<[1], [0], [0], [1], [0, 0, 1, 1], [], []>} : vector<8x16xf32>, vector<16x128xf32>, vector<8x128xf32> -> vector<8x128xf32>
    %c3 = arith.constant 3 : index
    %c0_21 = arith.constant 0 : index
    %c0_22 = arith.constant 0 : index
    %29 = vector.load %arg6[%c3, %c0_21, %c0_22] : memref<8x8x128xf32, #tpu.memory_space<vmem>>, vector<1x8x128xf32>
    %30 = vector.shape_cast %29 : vector<1x8x128xf32> to vector<8x128xf32>
    %31 = vector.shape_cast %28 : vector<8x128xf32> to vector<1x8x128xf32>
    tpu.vector_store %arg6[%c3, %c0_21, %c0_22], %31 {strides = array<i32>} : memref<8x8x128xf32, #tpu.memory_space<vmem>>, vector<1x8x128xf32>,
    %32 = vector.extract_strided_slice %7 {offsets = [4, 0, 0], sizes = [1, 16, 128], strides = [1, 1, 1]} : vector<8x16x128xf32> to vector<1x16x128xf32>
    %33 = vector.shape_cast %32 : vector<1x16x128xf32> to vector<16x128xf32>
    %cst_23 = arith.constant dense<0.000000e+00> : vector<8x128xf32>
    %34 = tpu.matmul %0, %33, %cst_23 {dimension_numbers = #tpu.dot_dimension_numbers<[1], [0], [0], [1], [0, 0, 1, 1], [], []>} : vector<8x16xf32>, vector<16x128xf32>, vector<8x128xf32> -> vector<8x128xf32>
    %c4 = arith.constant 4 : index
    %c0_24 = arith.constant 0 : index
    %c0_25 = arith.constant 0 : index
    %35 = vector.load %arg6[%c4, %c0_24, %c0_25] : memref<8x8x128xf32, #tpu.memory_space<vmem>>, vector<1x8x128xf32>
    %36 = vector.shape_cast %35 : vector<1x8x128xf32> to vector<8x128xf32>
    %37 = vector.shape_cast %34 : vector<8x128xf32> to vector<1x8x128xf32>
    tpu.vector_store %arg6[%c4, %c0_24, %c0_25], %37 {strides = array<i32>} : memref<8x8x128xf32, #tpu.memory_space<vmem>>, vector<1x8x128xf32>,
    %38 = vector.extract_strided_slice %7 {offsets = [5, 0, 0], sizes = [1, 16, 128], strides = [1, 1, 1]} : vector<8x16x128xf32> to vector<1x16x128xf32>
    %39 = vector.shape_cast %38 : vector<1x16x128xf32> to vector<16x128xf32>
    %cst_26 = arith.constant dense<0.000000e+00> : vector<8x128xf32>
    %40 = tpu.matmul %0, %39, %cst_26 {dimension_numbers = #tpu.dot_dimension_numbers<[1], [0], [0], [1], [0, 0, 1, 1], [], []>} : vector<8x16xf32>, vector<16x128xf32>, vector<8x128xf32> -> vector<8x128xf32>
    %c5 = arith.constant 5 : index
    %c0_27 = arith.constant 0 : index
    %c0_28 = arith.constant 0 : index
    %41 = vector.load %arg6[%c5, %c0_27, %c0_28] : memref<8x8x128xf32, #tpu.memory_space<vmem>>, vector<1x8x128xf32>
    %42 = vector.shape_cast %41 : vector<1x8x128xf32> to vector<8x128xf32>
    %43 = vector.shape_cast %40 : vector<8x128xf32> to vector<1x8x128xf32>
    tpu.vector_store %arg6[%c5, %c0_27, %c0_28], %43 {strides = array<i32>} : memref<8x8x128xf32, #tpu.memory_space<vmem>>, vector<1x8x128xf32>,
    %44 = vector.extract_strided_slice %7 {offsets = [6, 0, 0], sizes = [1, 16, 128], strides = [1, 1, 1]} : vector<8x16x128xf32> to vector<1x16x128xf32>
    %45 = vector.shape_cast %44 : vector<1x16x128xf32> to vector<16x128xf32>
    %cst_29 = arith.constant dense<0.000000e+00> : vector<8x128xf32>
    %46 = tpu.matmul %0, %45, %cst_29 {dimension_numbers = #tpu.dot_dimension_numbers<[1], [0], [0], [1], [0, 0, 1, 1], [], []>} : vector<8x16xf32>, vector<16x128xf32>, vector<8x128xf32> -> vector<8x128xf32>
    %c6 = arith.constant 6 : index
    %c0_30 = arith.constant 0 : index
    %c0_31 = arith.constant 0 : index
    %47 = vector.load %arg6[%c6, %c0_30, %c0_31] : memref<8x8x128xf32, #tpu.memory_space<vmem>>, vector<1x8x128xf32>
    %48 = vector.shape_cast %47 : vector<1x8x128xf32> to vector<8x128xf32>
    %49 = vector.shape_cast %46 : vector<8x128xf32> to vector<1x8x128xf32>
    tpu.vector_store %arg6[%c6, %c0_30, %c0_31], %49 {strides = array<i32>} : memref<8x8x128xf32, #tpu.memory_space<vmem>>, vector<1x8x128xf32>,
    %50 = vector.extract_strided_slice %7 {offsets = [7, 0, 0], sizes = [1, 16, 128], strides = [1, 1, 1]} : vector<8x16x128xf32> to vector<1x16x128xf32>
    %51 = vector.shape_cast %50 : vector<1x16x128xf32> to vector<16x128xf32>
    %cst_32 = arith.constant dense<0.000000e+00> : vector<8x128xf32>
    %52 = tpu.matmul %0, %51, %cst_32 {dimension_numbers = #tpu.dot_dimension_numbers<[1], [0], [0], [1], [0, 0, 1, 1], [], []>} : vector<8x16xf32>, vector<16x128xf32>, vector<8x128xf32> -> vector<8x128xf32>
    %c7 = arith.constant 7 : index
    %c0_33 = arith.constant 0 : index
    %c0_34 = arith.constant 0 : index
    %53 = vector.load %arg6[%c7, %c0_33, %c0_34] : memref<8x8x128xf32, #tpu.memory_space<vmem>>, vector<1x8x128xf32>
    %54 = vector.shape_cast %53 : vector<1x8x128xf32> to vector<8x128xf32>
    %55 = vector.shape_cast %52 : vector<8x128xf32> to vector<1x8x128xf32>
    tpu.vector_store %arg6[%c7, %c0_33, %c0_34], %55 {strides = array<i32>} : memref<8x8x128xf32, #tpu.memory_space<vmem>>, vector<1x8x128xf32>,
    %cst_35 = arith.constant dense<0.000000e+00> : vector<128x128xf32>
    %56 = tpu.matmul %5, %3, %cst_35 {dimension_numbers = #tpu.dot_dimension_numbers<[1], [0], [0], [1], [0, 0, 1, 1], [], []>} : vector<128x16xf32>, vector<16x128xf32>, vector<128x128xf32> -> vector<128x128xf32>
    %57 = vector.shape_cast %56 : vector<128x128xf32> to vector<8x16x128xf32>
    %58 = vector.extract_strided_slice %57 {offsets = [0, 0, 0], sizes = [1, 16, 128], strides = [1, 1, 1]} : vector<8x16x128xf32> to vector<1x16x128xf32>
    %59 = vector.shape_cast %58 : vector<1x16x128xf32> to vector<16x128xf32>
    %cst_36 = arith.constant dense<0.000000e+00> : vector<4x128xf32>
    %60 = tpu.matmul %2, %59, %cst_36 {dimension_numbers = #tpu.dot_dimension_numbers<[1], [0], [0], [1], [0, 0, 1, 1], [], []>} : vector<4x16xf32>, vector<16x128xf32>, vector<4x128xf32> -> vector<4x128xf32>
    %c0_37 = arith.constant 0 : index
    %c0_38 = arith.constant 0 : index
    %c0_39 = arith.constant 0 : index
    %61 = vector.load %arg7[%c0_37, %c0_38, %c0_39] : memref<8x4x128xf32, #tpu.memory_space<vmem>>, vector<1x4x128xf32>
    %62 = vector.shape_cast %61 : vector<1x4x128xf32> to vector<4x128xf32>
    %63 = vector.shape_cast %60 : vector<4x128xf32> to vector<1x4x128xf32>
    tpu.vector_store %arg7[%c0_37, %c0_38, %c0_39], %63 {strides = array<i32>} : memref<8x4x128xf32, #tpu.memory_space<vmem>>, vector<1x4x128xf32>,
    %64 = vector.extract_strided_slice %57 {offsets = [1, 0, 0], sizes = [1, 16, 128], strides = [1, 1, 1]} : vector<8x16x128xf32> to vector<1x16x128xf32>
    %65 = vector.shape_cast %64 : vector<1x16x128xf32> to vector<16x128xf32>
    %cst_40 = arith.constant dense<0.000000e+00> : vector<4x128xf32>
    %66 = tpu.matmul %2, %65, %cst_40 {dimension_numbers = #tpu.dot_dimension_numbers<[1], [0], [0], [1], [0, 0, 1, 1], [], []>} : vector<4x16xf32>, vector<16x128xf32>, vector<4x128xf32> -> vector<4x128xf32>
    %c1_41 = arith.constant 1 : index
    %c0_42 = arith.constant 0 : index
    %c0_43 = arith.constant 0 : index
    %67 = vector.load %arg7[%c1_41, %c0_42, %c0_43] : memref<8x4x128xf32, #tpu.memory_space<vmem>>, vector<1x4x128xf32>
    %68 = vector.shape_cast %67 : vector<1x4x128xf32> to vector<4x128xf32>
    %69 = vector.shape_cast %66 : vector<4x128xf32> to vector<1x4x128xf32>
    tpu.vector_store %arg7[%c1_41, %c0_42, %c0_43], %69 {strides = array<i32>} : memref<8x4x128xf32, #tpu.memory_space<vmem>>, vector<1x4x128xf32>,
    %70 = vector.extract_strided_slice %57 {offsets = [2, 0, 0], sizes = [1, 16, 128], strides = [1, 1, 1]} : vector<8x16x128xf32> to vector<1x16x128xf32>
    %71 = vector.shape_cast %70 : vector<1x16x128xf32> to vector<16x128xf32>
    %cst_44 = arith.constant dense<0.000000e+00> : vector<4x128xf32>
    %72 = tpu.matmul %2, %71, %cst_44 {dimension_numbers = #tpu.dot_dimension_numbers<[1], [0], [0], [1], [0, 0, 1, 1], [], []>} : vector<4x16xf32>, vector<16x128xf32>, vector<4x128xf32> -> vector<4x128xf32>
    %c2_45 = arith.constant 2 : index
    %c0_46 = arith.constant 0 : index
    %c0_47 = arith.constant 0 : index
    %73 = vector.load %arg7[%c2_45, %c0_46, %c0_47] : memref<8x4x128xf32, #tpu.memory_space<vmem>>, vector<1x4x128xf32>
    %74 = vector.shape_cast %73 : vector<1x4x128xf32> to vector<4x128xf32>
    %75 = vector.shape_cast %72 : vector<4x128xf32> to vector<1x4x128xf32>
    tpu.vector_store %arg7[%c2_45, %c0_46, %c0_47], %75 {strides = array<i32>} : memref<8x4x128xf32, #tpu.memory_space<vmem>>, vector<1x4x128xf32>,
    %76 = vector.extract_strided_slice %57 {offsets = [3, 0, 0], sizes = [1, 16, 128], strides = [1, 1, 1]} : vector<8x16x128xf32> to vector<1x16x128xf32>
    %77 = vector.shape_cast %76 : vector<1x16x128xf32> to vector<16x128xf32>
    %cst_48 = arith.constant dense<0.000000e+00> : vector<4x128xf32>
    %78 = tpu.matmul %2, %77, %cst_48 {dimension_numbers = #tpu.dot_dimension_numbers<[1], [0], [0], [1], [0, 0, 1, 1], [], []>} : vector<4x16xf32>, vector<16x128xf32>, vector<4x128xf32> -> vector<4x128xf32>
    %c3_49 = arith.constant 3 : index
    %c0_50 = arith.constant 0 : index
    %c0_51 = arith.constant 0 : index
    %79 = vector.load %arg7[%c3_49, %c0_50, %c0_51] : memref<8x4x128xf32, #tpu.memory_space<vmem>>, vector<1x4x128xf32>
    %80 = vector.shape_cast %79 : vector<1x4x128xf32> to vector<4x128xf32>
    %81 = vector.shape_cast %78 : vector<4x128xf32> to vector<1x4x128xf32>
    tpu.vector_store %arg7[%c3_49, %c0_50, %c0_51], %81 {strides = array<i32>} : memref<8x4x128xf32, #tpu.memory_space<vmem>>, vector<1x4x128xf32>,
    %82 = vector.extract_strided_slice %57 {offsets = [4, 0, 0], sizes = [1, 16, 128], strides = [1, 1, 1]} : vector<8x16x128xf32> to vector<1x16x128xf32>
    %83 = vector.shape_cast %82 : vector<1x16x128xf32> to vector<16x128xf32>
    %cst_52 = arith.constant dense<0.000000e+00> : vector<4x128xf32>
    %84 = tpu.matmul %2, %83, %cst_52 {dimension_numbers = #tpu.dot_dimension_numbers<[1], [0], [0], [1], [0, 0, 1, 1], [], []>} : vector<4x16xf32>, vector<16x128xf32>, vector<4x128xf32> -> vector<4x128xf32>
    %c4_53 = arith.constant 4 : index
    %c0_54 = arith.constant 0 : index
    %c0_55 = arith.constant 0 : index
    %85 = vector.load %arg7[%c4_53, %c0_54, %c0_55] : memref<8x4x128xf32, #tpu.memory_space<vmem>>, vector<1x4x128xf32>
    %86 = vector.shape_cast %85 : vector<1x4x128xf32> to vector<4x128xf32>
    %87 = vector.shape_cast %84 : vector<4x128xf32> to vector<1x4x128xf32>
    tpu.vector_store %arg7[%c4_53, %c0_54, %c0_55], %87 {strides = array<i32>} : memref<8x4x128xf32, #tpu.memory_space<vmem>>, vector<1x4x128xf32>,
    %88 = vector.extract_strided_slice %57 {offsets = [5, 0, 0], sizes = [1, 16, 128], strides = [1, 1, 1]} : vector<8x16x128xf32> to vector<1x16x128xf32>
    %89 = vector.shape_cast %88 : vector<1x16x128xf32> to vector<16x128xf32>
    %cst_56 = arith.constant dense<0.000000e+00> : vector<4x128xf32>
    %90 = tpu.matmul %2, %89, %cst_56 {dimension_numbers = #tpu.dot_dimension_numbers<[1], [0], [0], [1], [0, 0, 1, 1], [], []>} : vector<4x16xf32>, vector<16x128xf32>, vector<4x128xf32> -> vector<4x128xf32>
    %c5_57 = arith.constant 5 : index
    %c0_58 = arith.constant 0 : index
    %c0_59 = arith.constant 0 : index
    %91 = vector.load %arg7[%c5_57, %c0_58, %c0_59] : memref<8x4x128xf32, #tpu.memory_space<vmem>>, vector<1x4x128xf32>
    %92 = vector.shape_cast %91 : vector<1x4x128xf32> to vector<4x128xf32>
    %93 = vector.shape_cast %90 : vector<4x128xf32> to vector<1x4x128xf32>
    tpu.vector_store %arg7[%c5_57, %c0_58, %c0_59], %93 {strides = array<i32>} : memref<8x4x128xf32, #tpu.memory_space<vmem>>, vector<1x4x128xf32>,
    %94 = vector.extract_strided_slice %57 {offsets = [6, 0, 0], sizes = [1, 16, 128], strides = [1, 1, 1]} : vector<8x16x128xf32> to vector<1x16x128xf32>
    %95 = vector.shape_cast %94 : vector<1x16x128xf32> to vector<16x128xf32>
    %cst_60 = arith.constant dense<0.000000e+00> : vector<4x128xf32>
    %96 = tpu.matmul %2, %95, %cst_60 {dimension_numbers = #tpu.dot_dimension_numbers<[1], [0], [0], [1], [0, 0, 1, 1], [], []>} : vector<4x16xf32>, vector<16x128xf32>, vector<4x128xf32> -> vector<4x128xf32>
    %c6_61 = arith.constant 6 : index
    %c0_62 = arith.constant 0 : index
    %c0_63 = arith.constant 0 : index
    %97 = vector.load %arg7[%c6_61, %c0_62, %c0_63] : memref<8x4x128xf32, #tpu.memory_space<vmem>>, vector<1x4x128xf32>
    %98 = vector.shape_cast %97 : vector<1x4x128xf32> to vector<4x128xf32>
    %99 = vector.shape_cast %96 : vector<4x128xf32> to vector<1x4x128xf32>
    tpu.vector_store %arg7[%c6_61, %c0_62, %c0_63], %99 {strides = array<i32>} : memref<8x4x128xf32, #tpu.memory_space<vmem>>, vector<1x4x128xf32>,
    %100 = vector.extract_strided_slice %57 {offsets = [7, 0, 0], sizes = [1, 16, 128], strides = [1, 1, 1]} : vector<8x16x128xf32> to vector<1x16x128xf32>
    %101 = vector.shape_cast %100 : vector<1x16x128xf32> to vector<16x128xf32>
    %cst_64 = arith.constant dense<0.000000e+00> : vector<4x128xf32>
    %102 = tpu.matmul %2, %101, %cst_64 {dimension_numbers = #tpu.dot_dimension_numbers<[1], [0], [0], [1], [0, 0, 1, 1], [], []>} : vector<4x16xf32>, vector<16x128xf32>, vector<4x128xf32> -> vector<4x128xf32>
    %c7_65 = arith.constant 7 : index
    %c0_66 = arith.constant 0 : index
    %c0_67 = arith.constant 0 : index
    %103 = vector.load %arg7[%c7_65, %c0_66, %c0_67] : memref<8x4x128xf32, #tpu.memory_space<vmem>>, vector<1x4x128xf32>
    %104 = vector.shape_cast %103 : vector<1x4x128xf32> to vector<4x128xf32>
    %105 = vector.shape_cast %102 : vector<4x128xf32> to vector<1x4x128xf32>
    tpu.vector_store %arg7[%c7_65, %c0_66, %c0_67], %105 {strides = array<i32>} : memref<8x4x128xf32, #tpu.memory_space<vmem>>, vector<1x4x128xf32>,
    return
  }
  func.func @transform_0(%arg0: i32) -> (i32, i32, i32) {
    %c0_i32 = arith.constant 0 : i32
    %c0_i32_0 = arith.constant 0 : i32
    %c0_i32_1 = arith.constant 0 : i32
    return %arg0, %c0_i32, %c0_i32_0 : i32, i32, i32
  }
  func.func @transform_1(%arg0: i32) -> (i32, i32) {
    %c0_i32 = arith.constant 0 : i32
    %c0_i32_0 = arith.constant 0 : i32
    %c0_i32_1 = arith.constant 0 : i32
    return %c0_i32, %c0_i32_0 : i32, i32
  }
  func.func @transform_2(%arg0: i32) -> (i32, i32) {
    %c0_i32 = arith.constant 0 : i32
    %c0_i32_0 = arith.constant 0 : i32
    %c0_i32_1 = arith.constant 0 : i32
    return %c0_i32, %c0_i32_0 : i32, i32
  }
  func.func @transform_3(%arg0: i32) -> (i32, i32) {
    %c0_i32 = arith.constant 0 : i32
    %c0_i32_0 = arith.constant 0 : i32
    %c0_i32_1 = arith.constant 0 : i32
    return %c0_i32, %c0_i32_0 : i32, i32
  }
  func.func @transform_4(%arg0: i32) -> (i32, i32) {
    %c0_i32 = arith.constant 0 : i32
    %c0_i32_0 = arith.constant 0 : i32
    %c0_i32_1 = arith.constant 0 : i32
    return %c0_i32, %c0_i32_0 : i32, i32
  }
  func.func @transform_5(%arg0: i32) -> (i32, i32, i32) {
    %c0_i32 = arith.constant 0 : i32
    %c0_i32_0 = arith.constant 0 : i32
    %c0_i32_1 = arith.constant 0 : i32
    return %arg0, %c0_i32, %c0_i32_0 : i32, i32, i32
  }
  func.func @transform_6(%arg0: i32) -> (i32, i32, i32) {
    %c0_i32 = arith.constant 0 : i32
    %c0_i32_0 = arith.constant 0 : i32
    %c0_i32_1 = arith.constant 0 : i32
    return %arg0, %c0_i32, %c0_i32_0 : i32, i32, i32
  }
}

</mosaic_0001>

<llo_original>
// kernel: tpu_custom_call.1
$region0: #{tpu_custom_call.1}
  #allocation0 [shape = 'u32[]', space=smem, size = 0x4, offset = 0x4, fixed_abs, tag = 'smem constant byte address 0x4 - core index']
  #allocation1 [shape = 'u32[144,128]{1,0:T(1,128)}', space=vmem, size = 0x12000, scoped, tag = 'internal scratch']
  %s0 = inlined_call_operand.hbm [shape: f32[8,16,16], index: 0, kind: input, shape index: {}]
  %s1 = inlined_call_operand.hbm [shape: f32[8,16], index: 1, kind: input, shape index: {}]
  %s2 = inlined_call_operand.hbm [shape: f32[16,128], index: 2, kind: input, shape index: {}]
  %s3 = inlined_call_operand.vmem [shape: f32[4,16], index: 3, kind: input, shape index: {}]
  %s4 = inlined_call_operand.hbm [shape: f32[16,128], index: 4, kind: input, shape index: {}]
  %s5 = inlined_call_operand.hbm [shape: f32[8,8,128], index: 5, kind: output, shape index: {0}]
  %s6 = inlined_call_operand.hbm [shape: f32[8,4,128], index: 6, kind: output, shape index: {1}]
  %7 = xla_tuple %s5, %s6
  %s8 = sld [smem:[#allocation0]]
  $region54: #{tpu_custom_call.1} parent=0
    _
  %s10 = ssub.s32 1, %s8
  %s11 = scalar_select 0, %s10, %s8
  $region1: #{tpu_custom_call.1} parent=0
    #allocation2 [shape = 'u8[65536]{0}', space=vmem, size = 0x10000, scoped, tag = 'input window, operand 0, single buffered']
    #allocation3 [shape = 's32[1]{0}', space=sflag, size = 0x4, scoped, tag = 'scoped memory for tpu_custom_call.1']
    #allocation4 [shape = 's32[1]{0}', space=sflag, size = 0x4, scoped, tag = 'scoped memory for tpu_custom_call.1']
    #allocation5 [shape = 'u8[4096]{0}', space=vmem, size = 0x1000, scoped, tag = 'input window, operand 1, single buffered']
    #allocation6 [shape = 's32[1]{0}', space=sflag, size = 0x4, scoped, tag = 'scoped memory for tpu_custom_call.1']
    #allocation7 [shape = 'u8[8192]{0}', space=vmem, size = 0x2000, scoped, tag = 'input window, operand 2, single buffered']
    #allocation8 [shape = 'u8[8192]{0}', space=vmem, size = 0x2000, scoped, tag = 'input window, operand 4, single buffered']
    #allocation9 [shape = 's32[1]{0}', space=sflag, size = 0x4, scoped, tag = 'scoped memory for tpu_custom_call.1']
    #allocation10 [shape = 'u8[32768]{0}', space=vmem, size = 0x8000, scoped, tag = 'output window, operand 0, single buffered']
    #allocation11 [shape = 'u8[16384]{0}', space=vmem, size = 0x4000, scoped, tag = 'output window, operand 1, single buffered']
    #allocation12 [shape = 's32[1]{0}', space=sflag, size = 0x4, scoped, tag = 'scoped memory for tpu_custom_call.1']
    %12 = vsyncpa [#allocation3], 0
    %13 = vsyncpa [#allocation6], 0
    %14 = vsyncpa [#allocation9], 0
    %15 = vsyncpa [#allocation4], 0
    %16 = vsyncpa [#allocation12], 0
    // Predicated region
    $region2: #{tpu_custom_call.1} parent=1 // pred_check
      _
    $region3: #{tpu_custom_call.1} parent=1 // pred_check_branch
      %18 = sbr.rel (0) target = $region5
    $region4: #{tpu_custom_call.1} parent=1 // pred_region
      %s20 = ssub.s32 2048, 2048
      %21 = vsyncadd [#allocation3], %s20
      %s22 = sshll.u32 [#allocation2], 4
      %s23 = int_to_ptr.vmem [resolvable:$true] %s22
      %28 = dma.hbm_to_vmem [thread:$0]  %s0, 2048, %s23, [#allocation3], 128, 128, 8
    $region5: #{tpu_custom_call.1} parent=1 // pred_fallthru
      _
    // Predicated region
    $region6: #{tpu_custom_call.1} parent=1 // pred_check
      _
    $region7: #{tpu_custom_call.1} parent=1 // pred_check_branch
      %30 = sbr.rel (0) target = $region9
    $region8: #{tpu_custom_call.1} parent=1 // pred_region
      %s32 = ssub.s32 128, 128
      %33 = vsyncadd [#allocation6], %s32
      %s35 = sshll.u32 [#allocation5], 4
      %s36 = int_to_ptr.vmem [resolvable:$true] %s35
      %38 = dma.hbm_to_vmem [thread:$0]  %s1, 128, %s36, [#allocation6]
    $region9: #{tpu_custom_call.1} parent=1 // pred_fallthru
      _
    // Predicated region
    $region10: #{tpu_custom_call.1} parent=1 // pred_check
      _
    $region11: #{tpu_custom_call.1} parent=1 // pred_check_branch
      %40 = sbr.rel (0) target = $region13
    $region12: #{tpu_custom_call.1} parent=1 // pred_region
      %s42 = ssub.s32 256, 256
      %43 = vsyncadd [#allocation6], %s42
      %s44 = sshll.u32 [#allocation7], 4
      %s45 = int_to_ptr.vmem [resolvable:$true] %s44
      %50 = dma.hbm_to_vmem [thread:$0]  %s2, 256, %s45, [#allocation6], 128, 128, 8
    $region13: #{tpu_custom_call.1} parent=1 // pred_fallthru
      _
    // Predicated region
    $region14: #{tpu_custom_call.1} parent=1 // pred_check
      _
    $region15: #{tpu_custom_call.1} parent=1 // pred_check_branch
      %52 = sbr.rel (0) target = $region17
    $region16: #{tpu_custom_call.1} parent=1 // pred_region
      _
    $region17: #{tpu_custom_call.1} parent=1 // pred_fallthru
      _
    // Predicated region
    $region18: #{tpu_custom_call.1} parent=1 // pred_check
      _
    $region19: #{tpu_custom_call.1} parent=1 // pred_check_branch
      %54 = sbr.rel (0) target = $region21
    $region20: #{tpu_custom_call.1} parent=1 // pred_region
      %s56 = ssub.s32 256, 256
      %57 = vsyncadd [#allocation9], %s56
      %s58 = sshll.u32 [#allocation8], 4
      %s59 = int_to_ptr.vmem [resolvable:$true] %s58
      %64 = dma.hbm_to_vmem [thread:$0]  %s4, 256, %s59, [#allocation9], 128, 128, 8
    $region21: #{tpu_custom_call.1} parent=1 // pred_fallthru
      _
    // Predicated region
    $region22: #{tpu_custom_call.1} parent=1 // pred_check
      _
    $region23: #{tpu_custom_call.1} parent=1 // pred_check_branch
      %66 = sbr.rel (0) target = $region25
    $region24: #{tpu_custom_call.1} parent=1 // pred_region
      %67 = dma.done [#allocation3], 2048
    $region25: #{tpu_custom_call.1} parent=1 // pred_fallthru
      _
    // Predicated region
    $region26: #{tpu_custom_call.1} parent=1 // pred_check
      _
    $region27: #{tpu_custom_call.1} parent=1 // pred_check_branch
      %69 = sbr.rel (0) target = $region29
    $region28: #{tpu_custom_call.1} parent=1 // pred_region
      %70 = dma.done [#allocation6], 128
    $region29: #{tpu_custom_call.1} parent=1 // pred_fallthru
      _
    // Predicated region
    $region30: #{tpu_custom_call.1} parent=1 // pred_check
      _
    $region31: #{tpu_custom_call.1} parent=1 // pred_check_branch
      %72 = sbr.rel (0) target = $region33
    $region32: #{tpu_custom_call.1} parent=1 // pred_region
      %73 = dma.done [#allocation6], 256
    $region33: #{tpu_custom_call.1} parent=1 // pred_fallthru
      _
    // Predicated region
    $region34: #{tpu_custom_call.1} parent=1 // pred_check
      _
    $region35: #{tpu_custom_call.1} parent=1 // pred_check_branch
      %75 = sbr.rel (0) target = $region37
    $region36: #{tpu_custom_call.1} parent=1 // pred_region
      %76 = dma.done [#allocation9], 256
    $region37: #{tpu_custom_call.1} parent=1 // pred_fallthru
      _
    %v77 = vld [vmem:[#allocation5] sm:$0xff]
    %v78 = vld [vmem:[#allocation7] sm:$0xff]
    %v79 = vld [vmem:[#allocation7 + $0x8] sm:$0xff]
    %v80 = vld [vmem:[%s3] sm:$0xf]
    %v81 = vld [vmem:[#allocation8] sm:$0xff]
    %v82 = vld [vmem:[#allocation8 + $0x8] sm:$0xff]
    %v83 = vld [vmem:[#allocation2] sm:$0xff]
    %v84 = vld [vmem:[#allocation2 + $0x8] sm:$0xff]
    %v85 = vld [vmem:[#allocation2 + $0x10] sm:$0xff]
    %v86 = vld [vmem:[#allocation2 + $0x18] sm:$0xff]
    %v87 = vld [vmem:[#allocation2 + $0x20] sm:$0xff]
    %v88 = vld [vmem:[#allocation2 + $0x28] sm:$0xff]
    %v89 = vld [vmem:[#allocation2 + $0x30] sm:$0xff]
    %v90 = vld [vmem:[#allocation2 + $0x38] sm:$0xff]
    %v91 = vld [vmem:[#allocation2 + $0x40] sm:$0xff]
    %v92 = vld [vmem:[#allocation2 + $0x48] sm:$0xff]
    %v93 = vld [vmem:[#allocation2 + $0x50] sm:$0xff]
    %v94 = vld [vmem:[#allocation2 + $0x58] sm:$0xff]
    %v95 = vld [vmem:[#allocation2 + $0x60] sm:$0xff]
    %v96 = vld [vmem:[#allocation2 + $0x68] sm:$0xff]
    %v97 = vld [vmem:[#allocation2 + $0x70] sm:$0xff]
    %v98 = vld [vmem:[#allocation2 + $0x78] sm:$0xff]
    %vm99 = vcmask 130048
    %v101 = vsel %vm99, %v83, 0
    %v104 = vsel %vm99, %v84, 0
    %v107 = vsel %vm99, %v85, 0
    %v110 = vsel %vm99, %v86, 0
    %v113 = vsel %vm99, %v87, 0
    %v116 = vsel %vm99, %v88, 0
    %v119 = vsel %vm99, %v89, 0
    %v122 = vsel %vm99, %v90, 0
    %v125 = vsel %vm99, %v91, 0
    %v128 = vsel %vm99, %v92, 0
    %v131 = vsel %vm99, %v93, 0
    %v134 = vsel %vm99, %v94, 0
    %v137 = vsel %vm99, %v95, 0
    %v140 = vsel %vm99, %v96, 0
    %v143 = vsel %vm99, %v97, 0
    %v146 = vsel %vm99, %v98, 0
    %148 = vmatprep.subr.mxu0 0.0
    %149 = vmatpush1.msra.mxu0 %v78
    %150 = vmatprep.subr.mxu0 0.0
    %151 = vmatpush1.msra.mxu0 %v79
    %152 = vmatprep.subr.mxu0 0.0
    %153 = vmatpush1.msra.mxu0 0.0
    %154 = vmatprep.subr.mxu0 0.0
    %155 = vmatpush1.msra.mxu0 0.0
    %156 = vmatprep.subr.mxu0 0.0
    %157 = vmatpush1.msra.mxu0 0.0
    %158 = vmatprep.subr.mxu0 0.0
    %159 = vmatpush1.msra.mxu0 0.0
    %160 = vmatprep.subr.mxu0 0.0
    %161 = vmatpush1.msra.mxu0 0.0
    %162 = vmatprep.subr.mxu0 0.0
    %163 = vmatpush1.msra.mxu0 0.0
    %164 = vmatprep.subr.mxu0 0.0
    %165 = vmatpush1.msra.mxu0 0.0
    %166 = vmatprep.subr.mxu0 0.0
    %167 = vmatpush1.msra.mxu0 0.0
    %168 = vmatprep.subr.mxu0 0.0
    %169 = vmatpush1.msra.mxu0 0.0
    %170 = vmatprep.subr.mxu0 0.0
    %171 = vmatpush1.msra.mxu0 0.0
    %172 = vmatprep.subr.mxu0 0.0
    %173 = vmatpush1.msra.mxu0 0.0
    %174 = vmatprep.subr.mxu0 0.0
    %175 = vmatpush1.msra.mxu0 0.0
    %176 = vmatprep.subr.mxu0 0.0
    %177 = vmatpush1.msra.mxu0 0.0
    %178 = vmatprep.subr.mxu0 0.0
    %179 = vmatpush1.msra.mxu0 0.0
    %180 = vmatprep.subr.mxu0 0.0
    %181 = vmatpush1.msra.mxu0 0.0
    %182 = vmatprep.subr.mxu0 0.0
    %183 = vmatpush1.msra.mxu0 0.0
    %184 = vmatprep.subr.mxu0 0.0
    %185 = vmatpush1.msra.mxu0 0.0
    %186 = vmatprep.subr.mxu0 0.0
    %187 = vmatpush1.msra.mxu0 0.0
    %188 = vmatprep.subr.mxu0 0.0
    %189 = vmatpush1.msra.mxu0 0.0
    %190 = vmatprep.subr.mxu0 0.0
    %191 = vmatpush1.msra.mxu0 0.0
    %192 = vmatprep.subr.mxu0 0.0
    %193 = vmatpush1.msra.mxu0 0.0
    %194 = vmatprep.subr.mxu0 0.0
    %195 = vmatpush1.msra.mxu0 0.0
    %196 = vmatprep.subr.mxu0 0.0
    %197 = vmatpush1.msra.mxu0 0.0
    %198 = vmatprep.subr.mxu0 0.0
    %199 = vmatpush1.msra.mxu0 0.0
    %200 = vmatprep.subr.mxu0 0.0
    %201 = vmatpush1.msra.mxu0 0.0
    %202 = vmatprep.subr.mxu0 0.0
    %203 = vmatpush1.msra.mxu0 0.0
    %204 = vmatprep.subr.mxu0 0.0
    %205 = vmatpush1.msra.mxu0 0.0
    %206 = vmatprep.subr.mxu0 0.0
    %207 = vmatpush1.msra.mxu0 0.0
    %208 = vmatprep.subr.mxu0 0.0
    %209 = vmatpush1.msra.mxu0 0.0
    %210 = vmatprep.subr.mxu0 0.0
    %211 = vmatpush1.msra.mxu0 0.0
    %212 = vmatprep.mubr.f32.mxu0 0.0
    %213 = vmatmul.mubr.f32.gmra.mrb[0].mxu0 %v101
    %v214 = vpop.f32.mrb[0].mxu0
    %v215 = vadd.f32 0.0, %v214
    %v216 = vpop.f32.mrb[0].mxu0
    %217 = vmatprep.mubr.f32.mxu0 0.0
    %218 = vmatmul.mubr.f32.gmra.mrb[0].mxu0 %v104
    %v219 = vpop.f32.mrb[0].mxu0
    %v220 = vadd.f32 0.0, %v219
    %v221 = vpop.f32.mrb[0].mxu0
    %222 = vmatprep.mubr.f32.mxu0 0.0
    %223 = vmatmul.mubr.f32.gmra.mrb[0].mxu0 %v107
    %v224 = vpop.f32.mrb[0].mxu0
    %v225 = vadd.f32 0.0, %v224
    %v226 = vpop.f32.mrb[0].mxu0
    %227 = vmatprep.mubr.f32.mxu0 0.0
    %228 = vmatmul.mubr.f32.gmra.mrb[0].mxu0 %v110
    %v229 = vpop.f32.mrb[0].mxu0
    %v230 = vadd.f32 0.0, %v229
    %v231 = vpop.f32.mrb[0].mxu0
    %232 = vmatprep.mubr.f32.mxu0 0.0
    %233 = vmatmul.mubr.f32.gmra.mrb[0].mxu0 %v113
    %v234 = vpop.f32.mrb[0].mxu0
    %v235 = vadd.f32 0.0, %v234
    %v236 = vpop.f32.mrb[0].mxu0
    %237 = vmatprep.mubr.f32.mxu0 0.0
    %238 = vmatmul.mubr.f32.gmra.mrb[0].mxu0 %v116
    %v239 = vpop.f32.mrb[0].mxu0
    %v240 = vadd.f32 0.0, %v239
    %v241 = vpop.f32.mrb[0].mxu0
    %242 = vmatprep.mubr.f32.mxu0 0.0
    %243 = vmatmul.mubr.f32.gmra.mrb[0].mxu0 %v119
    %v244 = vpop.f32.mrb[0].mxu0
    %v245 = vadd.f32 0.0, %v244
    %v246 = vpop.f32.mrb[0].mxu0
    %247 = vmatprep.mubr.f32.mxu0 0.0
    %248 = vmatmul.mubr.f32.gmra.mrb[0].mxu0 %v122
    %v249 = vpop.f32.mrb[0].mxu0
    %v250 = vadd.f32 0.0, %v249
    %v251 = vpop.f32.mrb[0].mxu0
    %252 = vmatprep.mubr.f32.mxu0 0.0
    %253 = vmatmul.mubr.f32.gmra.mrb[0].mxu0 %v125
    %v254 = vpop.f32.mrb[0].mxu0
    %v255 = vadd.f32 0.0, %v254
    %v256 = vpop.f32.mrb[0].mxu0
    %257 = vmatprep.mubr.f32.mxu0 0.0
    %258 = vmatmul.mubr.f32.gmra.mrb[0].mxu0 %v128
    %v259 = vpop.f32.mrb[0].mxu0
    %v260 = vadd.f32 0.0, %v259
    %v261 = vpop.f32.mrb[0].mxu0
    %262 = vmatprep.mubr.f32.mxu0 0.0
    %263 = vmatmul.mubr.f32.gmra.mrb[0].mxu0 %v131
    %v264 = vpop.f32.mrb[0].mxu0
    %v265 = vadd.f32 0.0, %v264
    %v266 = vpop.f32.mrb[0].mxu0
    %267 = vmatprep.mubr.f32.mxu0 0.0
    %268 = vmatmul.mubr.f32.gmra.mrb[0].mxu0 %v134
    %v269 = vpop.f32.mrb[0].mxu0
    %v270 = vadd.f32 0.0, %v269
    %v271 = vpop.f32.mrb[0].mxu0
    %272 = vmatprep.mubr.f32.mxu0 0.0
    %273 = vmatmul.mubr.f32.gmra.mrb[0].mxu0 %v137
    %v274 = vpop.f32.mrb[0].mxu0
    %v275 = vadd.f32 0.0, %v274
    %v276 = vpop.f32.mrb[0].mxu0
    %277 = vmatprep.mubr.f32.mxu0 0.0
    %278 = vmatmul.mubr.f32.gmra.mrb[0].mxu0 %v140
    %v279 = vpop.f32.mrb[0].mxu0
    %v280 = vadd.f32 0.0, %v279
    %v281 = vpop.f32.mrb[0].mxu0
    %282 = vmatprep.mubr.f32.mxu0 0.0
    %283 = vmatmul.mubr.f32.gmra.mrb[0].mxu0 %v143
    %v284 = vpop.f32.mrb[0].mxu0
    %v285 = vadd.f32 0.0, %v284
    %v286 = vpop.f32.mrb[0].mxu0
    %287 = vmatprep.mubr.f32.mxu0 0.0
    %288 = vmatmul.mubr.f32.gmra.mrb[0].mxu0 %v146
    %v289 = vpop.f32.mrb[0].mxu0
    %v290 = vadd.f32 0.0, %v289
    %v291 = vpop.f32.mrb[0].mxu0
    %292 = vdwg.mxu0
    %v294 = vsel %vm99, %v77, 0
    %296 = vmatprep.subr.mxu0 0.0
    %297 = vmatpush1.msra.mxu0 %v215
    %298 = vmatprep.subr.mxu0 0.0
    %299 = vmatpush1.msra.mxu0 %v220
    %300 = vmatprep.subr.mxu0 0.0
    %301 = vmatpush1.msra.mxu0 0.0
    %302 = vmatprep.subr.mxu0 0.0
    %303 = vmatpush1.msra.mxu0 0.0
    %304 = vmatprep.subr.mxu0 0.0
    %305 = vmatpush1.msra.mxu0 0.0
    %306 = vmatprep.subr.mxu0 0.0
    %307 = vmatpush1.msra.mxu0 0.0
    %308 = vmatprep.subr.mxu0 0.0
    %309 = vmatpush1.msra.mxu0 0.0
    %310 = vmatprep.subr.mxu0 0.0
    %311 = vmatpush1.msra.mxu0 0.0
    %312 = vmatprep.subr.mxu0 0.0
    %313 = vmatpush1.msra.mxu0 0.0
    %314 = vmatprep.subr.mxu0 0.0
    %315 = vmatpush1.msra.mxu0 0.0
    %316 = vmatprep.subr.mxu0 0.0
    %317 = vmatpush1.msra.mxu0 0.0
    %318 = vmatprep.subr.mxu0 0.0
    %319 = vmatpush1.msra.mxu0 0.0
    %320 = vmatprep.subr.mxu0 0.0
    %321 = vmatpush1.msra.mxu0 0.0
    %322 = vmatprep.subr.mxu0 0.0
    %323 = vmatpush1.msra.mxu0 0.0
    %324 = vmatprep.subr.mxu0 0.0
    %325 = vmatpush1.msra.mxu0 0.0
    %326 = vmatprep.subr.mxu0 0.0
    %327 = vmatpush1.msra.mxu0 0.0
    %328 = vmatprep.subr.mxu0 0.0
    %329 = vmatpush1.msra.mxu0 0.0
    %330 = vmatprep.subr.mxu0 0.0
    %331 = vmatpush1.msra.mxu0 0.0
    %332 = vmatprep.subr.mxu0 0.0
    %333 = vmatpush1.msra.mxu0 0.0
    %334 = vmatprep.subr.mxu0 0.0
    %335 = vmatpush1.msra.mxu0 0.0
    %336 = vmatprep.subr.mxu0 0.0
    %337 = vmatpush1.msra.mxu0 0.0
    %338 = vmatprep.subr.mxu0 0.0
    %339 = vmatpush1.msra.mxu0 0.0
    %340 = vmatprep.subr.mxu0 0.0
    %341 = vmatpush1.msra.mxu0 0.0
    %342 = vmatprep.subr.mxu0 0.0
    %343 = vmatpush1.msra.mxu0 0.0
    %344 = vmatprep.subr.mxu0 0.0
    %345 = vmatpush1.msra.mxu0 0.0
    %346 = vmatprep.subr.mxu0 0.0
    %347 = vmatpush1.msra.mxu0 0.0
    %348 = vmatprep.subr.mxu0 0.0
    %349 = vmatpush1.msra.mxu0 0.0
    %350 = vmatprep.subr.mxu0 0.0
    %351 = vmatpush1.msra.mxu0 0.0
    %352 = vmatprep.subr.mxu0 0.0
    %353 = vmatpush1.msra.mxu0 0.0
    %354 = vmatprep.subr.mxu0 0.0
    %355 = vmatpush1.msra.mxu0 0.0
    %356 = vmatprep.subr.mxu0 0.0
    %357 = vmatpush1.msra.mxu0 0.0
    %358 = vmatprep.subr.mxu0 0.0
    %359 = vmatpush1.msra.mxu0 0.0
    %360 = vmatprep.mubr.f32.mxu0 0.0
    %361 = vmatmul.mubr.f32.gmra.mrb[0].mxu0 %v294
    %v362 = vpop.f32.mrb[0].mxu0
    %v363 = vadd.f32 0.0, %v362
    %v364 = vpop.f32.mrb[0].mxu0
    %365 = vdwg.mxu0
    %366 = vst [vmem:[#allocation10] sm:$0xff] %v363
    %367 = vmatprep.subr.mxu0 0.0
    %368 = vmatpush1.msra.mxu0 %v225
    %369 = vmatprep.subr.mxu0 0.0
    %370 = vmatpush1.msra.mxu0 %v230
    %371 = vmatprep.subr.mxu0 0.0
    %372 = vmatpush1.msra.mxu0 0.0
    %373 = vmatprep.subr.mxu0 0.0
    %374 = vmatpush1.msra.mxu0 0.0
    %375 = vmatprep.subr.mxu0 0.0
    %376 = vmatpush1.msra.mxu0 0.0
    %377 = vmatprep.subr.mxu0 0.0
    %378 = vmatpush1.msra.mxu0 0.0
    %379 = vmatprep.subr.mxu0 0.0
    %380 = vmatpush1.msra.mxu0 0.0
    %381 = vmatprep.subr.mxu0 0.0
    %382 = vmatpush1.msra.mxu0 0.0
    %383 = vmatprep.subr.mxu0 0.0
    %384 = vmatpush1.msra.mxu0 0.0
    %385 = vmatprep.subr.mxu0 0.0
    %386 = vmatpush1.msra.mxu0 0.0
    %387 = vmatprep.subr.mxu0 0.0
    %388 = vmatpush1.msra.mxu0 0.0
    %389 = vmatprep.subr.mxu0 0.0
    %390 = vmatpush1.msra.mxu0 0.0
    %391 = vmatprep.subr.mxu0 0.0
    %392 = vmatpush1.msra.mxu0 0.0
    %393 = vmatprep.subr.mxu0 0.0
    %394 = vmatpush1.msra.mxu0 0.0
    %395 = vmatprep.subr.mxu0 0.0
    %396 = vmatpush1.msra.mxu0 0.0
    %397 = vmatprep.subr.mxu0 0.0
    %398 = vmatpush1.msra.mxu0 0.0
    %399 = vmatprep.subr.mxu0 0.0
    %400 = vmatpush1.msra.mxu0 0.0
    %401 = vmatprep.subr.mxu0 0.0
    %402 = vmatpush1.msra.mxu0 0.0
    %403 = vmatprep.subr.mxu0 0.0
    %404 = vmatpush1.msra.mxu0 0.0
    %405 = vmatprep.subr.mxu0 0.0
    %406 = vmatpush1.msra.mxu0 0.0
    %407 = vmatprep.subr.mxu0 0.0
    %408 = vmatpush1.msra.mxu0 0.0
    %409 = vmatprep.subr.mxu0 0.0
    %410 = vmatpush1.msra.mxu0 0.0
    %411 = vmatprep.subr.mxu0 0.0
    %412 = vmatpush1.msra.mxu0 0.0
    %413 = vmatprep.subr.mxu0 0.0
    %414 = vmatpush1.msra.mxu0 0.0
    %415 = vmatprep.subr.mxu0 0.0
    %416 = vmatpush1.msra.mxu0 0.0
    %417 = vmatprep.subr.mxu0 0.0
    %418 = vmatpush1.msra.mxu0 0.0
    %419 = vmatprep.subr.mxu0 0.0
    %420 = vmatpush1.msra.mxu0 0.0
    %421 = vmatprep.subr.mxu0 0.0
    %422 = vmatpush1.msra.mxu0 0.0
    %423 = vmatprep.subr.mxu0 0.0
    %424 = vmatpush1.msra.mxu0 0.0
    %425 = vmatprep.subr.mxu0 0.0
    %426 = vmatpush1.msra.mxu0 0.0
    %427 = vmatprep.subr.mxu0 0.0
    %428 = vmatpush1.msra.mxu0 0.0
    %429 = vmatprep.subr.mxu0 0.0
    %430 = vmatpush1.msra.mxu0 0.0
    %431 = vmatprep.mubr.f32.mxu0 0.0
    %432 = vmatmul.mubr.f32.gmra.mrb[0].mxu0 %v294
    %v433 = vpop.f32.mrb[0].mxu0
    %v434 = vadd.f32 0.0, %v433
    %v435 = vpop.f32.mrb[0].mxu0
    %436 = vdwg.mxu0
    %s437 = scalar_lea.vmem [#allocation10], 8
    %438 = vst [vmem:[%s437] sm:$0xff] %v434
    %439 = vmatprep.subr.mxu0 0.0
    %440 = vmatpush1.msra.mxu0 %v235
    %441 = vmatprep.subr.mxu0 0.0
    %442 = vmatpush1.msra.mxu0 %v240
    %443 = vmatprep.subr.mxu0 0.0
    %444 = vmatpush1.msra.mxu0 0.0
    %445 = vmatprep.subr.mxu0 0.0
    %446 = vmatpush1.msra.mxu0 0.0
    %447 = vmatprep.subr.mxu0 0.0
    %448 = vmatpush1.msra.mxu0 0.0
    %449 = vmatprep.subr.mxu0 0.0
    %450 = vmatpush1.msra.mxu0 0.0
    %451 = vmatprep.subr.mxu0 0.0
    %452 = vmatpush1.msra.mxu0 0.0
    %453 = vmatprep.subr.mxu0 0.0
    %454 = vmatpush1.msra.mxu0 0.0
    %455 = vmatprep.subr.mxu0 0.0
    %456 = vmatpush1.msra.mxu0 0.0
    %457 = vmatprep.subr.mxu0 0.0
    %458 = vmatpush1.msra.mxu0 0.0
    %459 = vmatprep.subr.mxu0 0.0
    %460 = vmatpush1.msra.mxu0 0.0
    %461 = vmatprep.subr.mxu0 0.0
    %462 = vmatpush1.msra.mxu0 0.0
    %463 = vmatprep.subr.mxu0 0.0
    %464 = vmatpush1.msra.mxu0 0.0
    %465 = vmatprep.subr.mxu0 0.0
    %466 = vmatpush1.msra.mxu0 0.0
    %467 = vmatprep.subr.mxu0 0.0
    %468 = vmatpush1.msra.mxu0 0.0
    %469 = vmatprep.subr.mxu0 0.0
    %470 = vmatpush1.msra.mxu0 0.0
    %471 = vmatprep.subr.mxu0 0.0
    %472 = vmatpush1.msra.mxu0 0.0
    %473 = vmatprep.subr.mxu0 0.0
    %474 = vmatpush1.msra.mxu0 0.0
    %475 = vmatprep.subr.mxu0 0.0
    %476 = vmatpush1.msra.mxu0 0.0
    %477 = vmatprep.subr.mxu0 0.0
    %478 = vmatpush1.msra.mxu0 0.0
    %479 = vmatprep.subr.mxu0 0.0
    %480 = vmatpush1.msra.mxu0 0.0
    %481 = vmatprep.subr.mxu0 0.0
    %482 = vmatpush1.msra.mxu0 0.0
    %483 = vmatprep.subr.mxu0 0.0
    %484 = vmatpush1.msra.mxu0 0.0
    %485 = vmatprep.subr.mxu0 0.0
    %486 = vmatpush1.msra.mxu0 0.0
    %487 = vmatprep.subr.mxu0 0.0
    %488 = vmatpush1.msra.mxu0 0.0
    %489 = vmatprep.subr.mxu0 0.0
    %490 = vmatpush1.msra.mxu0 0.0
    %491 = vmatprep.subr.mxu0 0.0
    %492 = vmatpush1.msra.mxu0 0.0
    %493 = vmatprep.subr.mxu0 0.0
    %494 = vmatpush1.msra.mxu0 0.0
    %495 = vmatprep.subr.mxu0 0.0
    %496 = vmatpush1.msra.mxu0 0.0
    %497 = vmatprep.subr.mxu0 0.0
    %498 = vmatpush1.msra.mxu0 0.0
    %499 = vmatprep.subr.mxu0 0.0
    %500 = vmatpush1.msra.mxu0 0.0
    %501 = vmatprep.subr.mxu0 0.0
    %502 = vmatpush1.msra.mxu0 0.0
    %503 = vmatprep.mubr.f32.mxu0 0.0
    %504 = vmatmul.mubr.f32.gmra.mrb[0].mxu0 %v294
    %v505 = vpop.f32.mrb[0].mxu0
    %v506 = vadd.f32 0.0, %v505
    %v507 = vpop.f32.mrb[0].mxu0
    %508 = vdwg.mxu0
    %s509 = scalar_lea.vmem [#allocation10], 16
    %510 = vst [vmem:[%s509] sm:$0xff] %v506
    %511 = vmatprep.subr.mxu0 0.0
    %512 = vmatpush1.msra.mxu0 %v245
    %513 = vmatprep.subr.mxu0 0.0
    %514 = vmatpush1.msra.mxu0 %v250
    %515 = vmatprep.subr.mxu0 0.0
    %516 = vmatpush1.msra.mxu0 0.0
    %517 = vmatprep.subr.mxu0 0.0
    %518 = vmatpush1.msra.mxu0 0.0
    %519 = vmatprep.subr.mxu0 0.0
    %520 = vmatpush1.msra.mxu0 0.0
    %521 = vmatprep.subr.mxu0 0.0
    %522 = vmatpush1.msra.mxu0 0.0
    %523 = vmatprep.subr.mxu0 0.0
    %524 = vmatpush1.msra.mxu0 0.0
    %525 = vmatprep.subr.mxu0 0.0
    %526 = vmatpush1.msra.mxu0 0.0
    %527 = vmatprep.subr.mxu0 0.0
    %528 = vmatpush1.msra.mxu0 0.0
    %529 = vmatprep.subr.mxu0 0.0
    %530 = vmatpush1.msra.mxu0 0.0
    %531 = vmatprep.subr.mxu0 0.0
    %532 = vmatpush1.msra.mxu0 0.0
    %533 = vmatprep.subr.mxu0 0.0
    %534 = vmatpush1.msra.mxu0 0.0
    %535 = vmatprep.subr.mxu0 0.0
    %536 = vmatpush1.msra.mxu0 0.0
    %537 = vmatprep.subr.mxu0 0.0
    %538 = vmatpush1.msra.mxu0 0.0
    %539 = vmatprep.subr.mxu0 0.0
    %540 = vmatpush1.msra.mxu0 0.0
    %541 = vmatprep.subr.mxu0 0.0
    %542 = vmatpush1.msra.mxu0 0.0
    %543 = vmatprep.subr.mxu0 0.0
    %544 = vmatpush1.msra.mxu0 0.0
    %545 = vmatprep.subr.mxu0 0.0
    %546 = vmatpush1.msra.mxu0 0.0
    %547 = vmatprep.subr.mxu0 0.0
    %548 = vmatpush1.msra.mxu0 0.0
    %549 = vmatprep.subr.mxu0 0.0
    %550 = vmatpush1.msra.mxu0 0.0
    %551 = vmatprep.subr.mxu0 0.0
    %552 = vmatpush1.msra.mxu0 0.0
    %553 = vmatprep.subr.mxu0 0.0
    %554 = vmatpush1.msra.mxu0 0.0
    %555 = vmatprep.subr.mxu0 0.0
    %556 = vmatpush1.msra.mxu0 0.0
    %557 = vmatprep.subr.mxu0 0.0
    %558 = vmatpush1.msra.mxu0 0.0
    %559 = vmatprep.subr.mxu0 0.0
    %560 = vmatpush1.msra.mxu0 0.0
    %561 = vmatprep.subr.mxu0 0.0
    %562 = vmatpush1.msra.mxu0 0.0
    %563 = vmatprep.subr.mxu0 0.0
    %564 = vmatpush1.msra.mxu0 0.0
    %565 = vmatprep.subr.mxu0 0.0
    %566 = vmatpush1.msra.mxu0 0.0
    %567 = vmatprep.subr.mxu0 0.0
    %568 = vmatpush1.msra.mxu0 0.0
    %569 = vmatprep.subr.mxu0 0.0
    %570 = vmatpush1.msra.mxu0 0.0
    %571 = vmatprep.subr.mxu0 0.0
    %572 = vmatpush1.msra.mxu0 0.0
    %573 = vmatprep.subr.mxu0 0.0
    %574 = vmatpush1.msra.mxu0 0.0
    %575 = vmatprep.mubr.f32.mxu0 0.0
    %576 = vmatmul.mubr.f32.gmra.mrb[0].mxu0 %v294
    %v577 = vpop.f32.mrb[0].mxu0
    %v578 = vadd.f32 0.0, %v577
    %v579 = vpop.f32.mrb[0].mxu0
    %580 = vdwg.mxu0
    %s581 = scalar_lea.vmem [#allocation10], 24
    %582 = vst [vmem:[%s581] sm:$0xff] %v578
    %583 = vmatprep.subr.mxu0 0.0
    %584 = vmatpush1.msra.mxu0 %v255
    %585 = vmatprep.subr.mxu0 0.0
    %586 = vmatpush1.msra.mxu0 %v260
    %587 = vmatprep.subr.mxu0 0.0
    %588 = vmatpush1.msra.mxu0 0.0
    %589 = vmatprep.subr.mxu0 0.0
    %590 = vmatpush1.msra.mxu0 0.0
    %591 = vmatprep.subr.mxu0 0.0
    %592 = vmatpush1.msra.mxu0 0.0
    %593 = vmatprep.subr.mxu0 0.0
    %594 = vmatpush1.msra.mxu0 0.0
    %595 = vmatprep.subr.mxu0 0.0
    %596 = vmatpush1.msra.mxu0 0.0
    %597 = vmatprep.subr.mxu0 0.0
    %598 = vmatpush1.msra.mxu0 0.0
    %599 = vmatprep.subr.mxu0 0.0
    %600 = vmatpush1.msra.mxu0 0.0
    %601 = vmatprep.subr.mxu0 0.0
    %602 = vmatpush1.msra.mxu0 0.0
    %603 = vmatprep.subr.mxu0 0.0
    %604 = vmatpush1.msra.mxu0 0.0
    %605 = vmatprep.subr.mxu0 0.0
    %606 = vmatpush1.msra.mxu0 0.0
    %607 = vmatprep.subr.mxu0 0.0
    %608 = vmatpush1.msra.mxu0 0.0
    %609 = vmatprep.subr.mxu0 0.0
    %610 = vmatpush1.msra.mxu0 0.0
    %611 = vmatprep.subr.mxu0 0.0
    %612 = vmatpush1.msra.mxu0 0.0
    %613 = vmatprep.subr.mxu0 0.0
    %614 = vmatpush1.msra.mxu0 0.0
    %615 = vmatprep.subr.mxu0 0.0
    %616 = vmatpush1.msra.mxu0 0.0
    %617 = vmatprep.subr.mxu0 0.0
    %618 = vmatpush1.msra.mxu0 0.0
    %619 = vmatprep.subr.mxu0 0.0
    %620 = vmatpush1.msra.mxu0 0.0
    %621 = vmatprep.subr.mxu0 0.0
    %622 = vmatpush1.msra.mxu0 0.0
    %623 = vmatprep.subr.mxu0 0.0
    %624 = vmatpush1.msra.mxu0 0.0
    %625 = vmatprep.subr.mxu0 0.0
    %626 = vmatpush1.msra.mxu0 0.0
    %627 = vmatprep.subr.mxu0 0.0
    %628 = vmatpush1.msra.mxu0 0.0
    %629 = vmatprep.subr.mxu0 0.0
    %630 = vmatpush1.msra.mxu0 0.0
    %631 = vmatprep.subr.mxu0 0.0
    %632 = vmatpush1.msra.mxu0 0.0
    %633 = vmatprep.subr.mxu0 0.0
    %634 = vmatpush1.msra.mxu0 0.0
    %635 = vmatprep.subr.mxu0 0.0
    %636 = vmatpush1.msra.mxu0 0.0
    %637 = vmatprep.subr.mxu0 0.0
    %638 = vmatpush1.msra.mxu0 0.0
    %639 = vmatprep.subr.mxu0 0.0
    %640 = vmatpush1.msra.mxu0 0.0
    %641 = vmatprep.subr.mxu0 0.0
    %642 = vmatpush1.msra.mxu0 0.0
    %643 = vmatprep.subr.mxu0 0.0
    %644 = vmatpush1.msra.mxu0 0.0
    %645 = vmatprep.subr.mxu0 0.0
    %646 = vmatpush1.msra.mxu0 0.0
    %647 = vmatprep.mubr.f32.mxu0 0.0
    %648 = vmatmul.mubr.f32.gmra.mrb[0].mxu0 %v294
    %v649 = vpop.f32.mrb[0].mxu0
    %v650 = vadd.f32 0.0, %v649
    %v651 = vpop.f32.mrb[0].mxu0
    %652 = vdwg.mxu0
    %s653 = scalar_lea.vmem [#allocation10], 32
    %654 = vst [vmem:[%s653] sm:$0xff] %v650
    %655 = vmatprep.subr.mxu0 0.0
    %656 = vmatpush1.msra.mxu0 %v265
    %657 = vmatprep.subr.mxu0 0.0
    %658 = vmatpush1.msra.mxu0 %v270
    %659 = vmatprep.subr.mxu0 0.0
    %660 = vmatpush1.msra.mxu0 0.0
    %661 = vmatprep.subr.mxu0 0.0
    %662 = vmatpush1.msra.mxu0 0.0
    %663 = vmatprep.subr.mxu0 0.0
    %664 = vmatpush1.msra.mxu0 0.0
    %665 = vmatprep.subr.mxu0 0.0
    %666 = vmatpush1.msra.mxu0 0.0
    %667 = vmatprep.subr.mxu0 0.0
    %668 = vmatpush1.msra.mxu0 0.0
    %669 = vmatprep.subr.mxu0 0.0
    %670 = vmatpush1.msra.mxu0 0.0
    %671 = vmatprep.subr.mxu0 0.0
    %672 = vmatpush1.msra.mxu0 0.0
    %673 = vmatprep.subr.mxu0 0.0
    %674 = vmatpush1.msra.mxu0 0.0
    %675 = vmatprep.subr.mxu0 0.0
    %676 = vmatpush1.msra.mxu0 0.0
    %677 = vmatprep.subr.mxu0 0.0
    %678 = vmatpush1.msra.mxu0 0.0
    %679 = vmatprep.subr.mxu0 0.0
    %680 = vmatpush1.msra.mxu0 0.0
    %681 = vmatprep.subr.mxu0 0.0
    %682 = vmatpush1.msra.mxu0 0.0
    %683 = vmatprep.subr.mxu0 0.0
    %684 = vmatpush1.msra.mxu0 0.0
    %685 = vmatprep.subr.mxu0 0.0
    %686 = vmatpush1.msra.mxu0 0.0
    %687 = vmatprep.subr.mxu0 0.0
    %688 = vmatpush1.msra.mxu0 0.0
    %689 = vmatprep.subr.mxu0 0.0
    %690 = vmatpush1.msra.mxu0 0.0
    %691 = vmatprep.subr.mxu0 0.0
    %692 = vmatpush1.msra.mxu0 0.0
    %693 = vmatprep.subr.mxu0 0.0
    %694 = vmatpush1.msra.mxu0 0.0
    %695 = vmatprep.subr.mxu0 0.0
    %696 = vmatpush1.msra.mxu0 0.0
    %697 = vmatprep.subr.mxu0 0.0
    %698 = vmatpush1.msra.mxu0 0.0
    %699 = vmatprep.subr.mxu0 0.0
    %700 = vmatpush1.msra.mxu0 0.0
    %701 = vmatprep.subr.mxu0 0.0
    %702 = vmatpush1.msra.mxu0 0.0
    %703 = vmatprep.subr.mxu0 0.0
    %704 = vmatpush1.msra.mxu0 0.0
    %705 = vmatprep.subr.mxu0 0.0
    %706 = vmatpush1.msra.mxu0 0.0
    %707 = vmatprep.subr.mxu0 0.0
    %708 = vmatpush1.msra.mxu0 0.0
    %709 = vmatprep.subr.mxu0 0.0
    %710 = vmatpush1.msra.mxu0 0.0
    %711 = vmatprep.subr.mxu0 0.0
    %712 = vmatpush1.msra.mxu0 0.0
    %713 = vmatprep.subr.mxu0 0.0
    %714 = vmatpush1.msra.mxu0 0.0
    %715 = vmatprep.subr.mxu0 0.0
    %716 = vmatpush1.msra.mxu0 0.0
    %717 = vmatprep.subr.mxu0 0.0
    %718 = vmatpush1.msra.mxu0 0.0
    %719 = vmatprep.mubr.f32.mxu0 0.0
    %720 = vmatmul.mubr.f32.gmra.mrb[0].mxu0 %v294
    %v721 = vpop.f32.mrb[0].mxu0
    %v722 = vadd.f32 0.0, %v721
    %v723 = vpop.f32.mrb[0].mxu0
    %724 = vdwg.mxu0
    %s725 = scalar_lea.vmem [#allocation10], 40
    %726 = vst [vmem:[%s725] sm:$0xff] %v722
    %727 = vmatprep.subr.mxu0 0.0
    %728 = vmatpush1.msra.mxu0 %v275
    %729 = vmatprep.subr.mxu0 0.0
    %730 = vmatpush1.msra.mxu0 %v280
    %731 = vmatprep.subr.mxu0 0.0
    %732 = vmatpush1.msra.mxu0 0.0
    %733 = vmatprep.subr.mxu0 0.0
    %734 = vmatpush1.msra.mxu0 0.0
    %735 = vmatprep.subr.mxu0 0.0
    %736 = vmatpush1.msra.mxu0 0.0
    %737 = vmatprep.subr.mxu0 0.0
    %738 = vmatpush1.msra.mxu0 0.0
    %739 = vmatprep.subr.mxu0 0.0
    %740 = vmatpush1.msra.mxu0 0.0
    %741 = vmatprep.subr.mxu0 0.0
    %742 = vmatpush1.msra.mxu0 0.0
    %743 = vmatprep.subr.mxu0 0.0
    %744 = vmatpush1.msra.mxu0 0.0
    %745 = vmatprep.subr.mxu0 0.0
    %746 = vmatpush1.msra.mxu0 0.0
    %747 = vmatprep.subr.mxu0 0.0
    %748 = vmatpush1.msra.mxu0 0.0
    %749 = vmatprep.subr.mxu0 0.0
    %750 = vmatpush1.msra.mxu0 0.0
    %751 = vmatprep.subr.mxu0 0.0
    %752 = vmatpush1.msra.mxu0 0.0
    %753 = vmatprep.subr.mxu0 0.0
    %754 = vmatpush1.msra.mxu0 0.0
    %755 = vmatprep.subr.mxu0 0.0
    %756 = vmatpush1.msra.mxu0 0.0
    %757 = vmatprep.subr.mxu0 0.0
    %758 = vmatpush1.msra.mxu0 0.0
    %759 = vmatprep.subr.mxu0 0.0
    %760 = vmatpush1.msra.mxu0 0.0
    %761 = vmatprep.subr.mxu0 0.0
    %762 = vmatpush1.msra.mxu0 0.0
    %763 = vmatprep.subr.mxu0 0.0
    %764 = vmatpush1.msra.mxu0 0.0
    %765 = vmatprep.subr.mxu0 0.0
    %766 = vmatpush1.msra.mxu0 0.0
    %767 = vmatprep.subr.mxu0 0.0
    %768 = vmatpush1.msra.mxu0 0.0
    %769 = vmatprep.subr.mxu0 0.0
    %770 = vmatpush1.msra.mxu0 0.0
    %771 = vmatprep.subr.mxu0 0.0
    %772 = vmatpush1.msra.mxu0 0.0
    %773 = vmatprep.subr.mxu0 0.0
    %774 = vmatpush1.msra.mxu0 0.0
    %775 = vmatprep.subr.mxu0 0.0
    %776 = vmatpush1.msra.mxu0 0.0
    %777 = vmatprep.subr.mxu0 0.0
    %778 = vmatpush1.msra.mxu0 0.0
    %779 = vmatprep.subr.mxu0 0.0
    %780 = vmatpush1.msra.mxu0 0.0
    %781 = vmatprep.subr.mxu0 0.0
    %782 = vmatpush1.msra.mxu0 0.0
    %783 = vmatprep.subr.mxu0 0.0
    %784 = vmatpush1.msra.mxu0 0.0
    %785 = vmatprep.subr.mxu0 0.0
    %786 = vmatpush1.msra.mxu0 0.0
    %787 = vmatprep.subr.mxu0 0.0
    %788 = vmatpush1.msra.mxu0 0.0
    %789 = vmatprep.subr.mxu0 0.0
    %790 = vmatpush1.msra.mxu0 0.0
    %791 = vmatprep.mubr.f32.mxu0 0.0
    %792 = vmatmul.mubr.f32.gmra.mrb[0].mxu0 %v294
    %v793 = vpop.f32.mrb[0].mxu0
    %v794 = vadd.f32 0.0, %v793
    %v795 = vpop.f32.mrb[0].mxu0
    %796 = vdwg.mxu0
    %s797 = scalar_lea.vmem [#allocation10], 48
    %798 = vst [vmem:[%s797] sm:$0xff] %v794
    %799 = vmatprep.subr.mxu0 0.0
    %800 = vmatpush1.msra.mxu0 %v285
    %801 = vmatprep.subr.mxu0 0.0
    %802 = vmatpush1.msra.mxu0 %v290
    %803 = vmatprep.subr.mxu0 0.0
    %804 = vmatpush1.msra.mxu0 0.0
    %805 = vmatprep.subr.mxu0 0.0
    %806 = vmatpush1.msra.mxu0 0.0
    %807 = vmatprep.subr.mxu0 0.0
    %808 = vmatpush1.msra.mxu0 0.0
    %809 = vmatprep.subr.mxu0 0.0
    %810 = vmatpush1.msra.mxu0 0.0
    %811 = vmatprep.subr.mxu0 0.0
    %812 = vmatpush1.msra.mxu0 0.0
    %813 = vmatprep.subr.mxu0 0.0
    %814 = vmatpush1.msra.mxu0 0.0
    %815 = vmatprep.subr.mxu0 0.0
    %816 = vmatpush1.msra.mxu0 0.0
    %817 = vmatprep.subr.mxu0 0.0
    %818 = vmatpush1.msra.mxu0 0.0
    %819 = vmatprep.subr.mxu0 0.0
    %820 = vmatpush1.msra.mxu0 0.0
    %821 = vmatprep.subr.mxu0 0.0
    %822 = vmatpush1.msra.mxu0 0.0
    %823 = vmatprep.subr.mxu0 0.0
    %824 = vmatpush1.msra.mxu0 0.0
    %825 = vmatprep.subr.mxu0 0.0
    %826 = vmatpush1.msra.mxu0 0.0
    %827 = vmatprep.subr.mxu0 0.0
    %828 = vmatpush1.msra.mxu0 0.0
    %829 = vmatprep.subr.mxu0 0.0
    %830 = vmatpush1.msra.mxu0 0.0
    %831 = vmatprep.subr.mxu0 0.0
    %832 = vmatpush1.msra.mxu0 0.0
    %833 = vmatprep.subr.mxu0 0.0
    %834 = vmatpush1.msra.mxu0 0.0
    %835 = vmatprep.subr.mxu0 0.0
    %836 = vmatpush1.msra.mxu0 0.0
    %837 = vmatprep.subr.mxu0 0.0
    %838 = vmatpush1.msra.mxu0 0.0
    %839 = vmatprep.subr.mxu0 0.0
    %840 = vmatpush1.msra.mxu0 0.0
    %841 = vmatprep.subr.mxu0 0.0
    %842 = vmatpush1.msra.mxu0 0.0
    %843 = vmatprep.subr.mxu0 0.0
    %844 = vmatpush1.msra.mxu0 0.0
    %845 = vmatprep.subr.mxu0 0.0
    %846 = vmatpush1.msra.mxu0 0.0
    %847 = vmatprep.subr.mxu0 0.0
    %848 = vmatpush1.msra.mxu0 0.0
    %849 = vmatprep.subr.mxu0 0.0
    %850 = vmatpush1.msra.mxu0 0.0
    %851 = vmatprep.subr.mxu0 0.0
    %852 = vmatpush1.msra.mxu0 0.0
    %853 = vmatprep.subr.mxu0 0.0
    %854 = vmatpush1.msra.mxu0 0.0
    %855 = vmatprep.subr.mxu0 0.0
    %856 = vmatpush1.msra.mxu0 0.0
    %857 = vmatprep.subr.mxu0 0.0
    %858 = vmatpush1.msra.mxu0 0.0
    %859 = vmatprep.subr.mxu0 0.0
    %860 = vmatpush1.msra.mxu0 0.0
    %861 = vmatprep.subr.mxu0 0.0
    %862 = vmatpush1.msra.mxu0 0.0
    %863 = vmatprep.mubr.f32.mxu0 0.0
    %864 = vmatmul.mubr.f32.gmra.mrb[0].mxu0 %v294
    %v865 = vpop.f32.mrb[0].mxu0
    %v866 = vadd.f32 0.0, %v865
    %v867 = vpop.f32.mrb[0].mxu0
    %868 = vdwg.mxu0
    %s869 = scalar_lea.vmem [#allocation10], 56
    %870 = vst [vmem:[%s869] sm:$0xff] %v866
    %871 = vmatprep.subr.mxu0 0.0
    %872 = vmatpush1.msra.mxu0 %v81
    %873 = vmatprep.subr.mxu0 0.0
    %874 = vmatpush1.msra.mxu0 %v82
    %875 = vmatprep.subr.mxu0 0.0
    %876 = vmatpush1.msra.mxu0 0.0
    %877 = vmatprep.subr.mxu0 0.0
    %878 = vmatpush1.msra.mxu0 0.0
    %879 = vmatprep.subr.mxu0 0.0
    %880 = vmatpush1.msra.mxu0 0.0
    %881 = vmatprep.subr.mxu0 0.0
    %882 = vmatpush1.msra.mxu0 0.0
    %883 = vmatprep.subr.mxu0 0.0
    %884 = vmatpush1.msra.mxu0 0.0
    %885 = vmatprep.subr.mxu0 0.0
    %886 = vmatpush1.msra.mxu0 0.0
    %887 = vmatprep.subr.mxu0 0.0
    %888 = vmatpush1.msra.mxu0 0.0
    %889 = vmatprep.subr.mxu0 0.0
    %890 = vmatpush1.msra.mxu0 0.0
    %891 = vmatprep.subr.mxu0 0.0
    %892 = vmatpush1.msra.mxu0 0.0
    %893 = vmatprep.subr.mxu0 0.0
    %894 = vmatpush1.msra.mxu0 0.0
    %895 = vmatprep.subr.mxu0 0.0
    %896 = vmatpush1.msra.mxu0 0.0
    %897 = vmatprep.subr.mxu0 0.0
    %898 = vmatpush1.msra.mxu0 0.0
    %899 = vmatprep.subr.mxu0 0.0
    %900 = vmatpush1.msra.mxu0 0.0
    %901 = vmatprep.subr.mxu0 0.0
    %902 = vmatpush1.msra.mxu0 0.0
    %903 = vmatprep.subr.mxu0 0.0
    %904 = vmatpush1.msra.mxu0 0.0
    %905 = vmatprep.subr.mxu0 0.0
    %906 = vmatpush1.msra.mxu0 0.0
    %907 = vmatprep.subr.mxu0 0.0
    %908 = vmatpush1.msra.mxu0 0.0
    %909 = vmatprep.subr.mxu0 0.0
    %910 = vmatpush1.msra.mxu0 0.0
    %911 = vmatprep.subr.mxu0 0.0
    %912 = vmatpush1.msra.mxu0 0.0
    %913 = vmatprep.subr.mxu0 0.0
    %914 = vmatpush1.msra.mxu0 0.0
    %915 = vmatprep.subr.mxu0 0.0
    %916 = vmatpush1.msra.mxu0 0.0
    %917 = vmatprep.subr.mxu0 0.0
    %918 = vmatpush1.msra.mxu0 0.0
    %919 = vmatprep.subr.mxu0 0.0
    %920 = vmatpush1.msra.mxu0 0.0
    %921 = vmatprep.subr.mxu0 0.0
    %922 = vmatpush1.msra.mxu0 0.0
    %923 = vmatprep.subr.mxu0 0.0
    %924 = vmatpush1.msra.mxu0 0.0
    %925 = vmatprep.subr.mxu0 0.0
    %926 = vmatpush1.msra.mxu0 0.0
    %927 = vmatprep.subr.mxu0 0.0
    %928 = vmatpush1.msra.mxu0 0.0
    %929 = vmatprep.subr.mxu0 0.0
    %930 = vmatpush1.msra.mxu0 0.0
    %931 = vmatprep.subr.mxu0 0.0
    %932 = vmatpush1.msra.mxu0 0.0
    %933 = vmatprep.subr.mxu0 0.0
    %934 = vmatpush1.msra.mxu0 0.0
    %935 = vmatprep.mubr.f32.mxu0 0.0
    %936 = vmatmul.mubr.f32.gmra.mrb[0].mxu0 %v101
    %v937 = vpop.f32.mrb[0].mxu0
    %v938 = vadd.f32 0.0, %v937
    %v939 = vpop.f32.mrb[0].mxu0
    %940 = vmatprep.mubr.f32.mxu0 0.0
    %941 = vmatmul.mubr.f32.gmra.mrb[0].mxu0 %v104
    %v942 = vpop.f32.mrb[0].mxu0
    %v943 = vadd.f32 0.0, %v942
    %v944 = vpop.f32.mrb[0].mxu0
    %945 = vmatprep.mubr.f32.mxu0 0.0
    %946 = vmatmul.mubr.f32.gmra.mrb[0].mxu0 %v107
    %v947 = vpop.f32.mrb[0].mxu0
    %v948 = vadd.f32 0.0, %v947
    %v949 = vpop.f32.mrb[0].mxu0
    %950 = vmatprep.mubr.f32.mxu0 0.0
    %951 = vmatmul.mubr.f32.gmra.mrb[0].mxu0 %v110
    %v952 = vpop.f32.mrb[0].mxu0
    %v953 = vadd.f32 0.0, %v952
    %v954 = vpop.f32.mrb[0].mxu0
    %955 = vmatprep.mubr.f32.mxu0 0.0
    %956 = vmatmul.mubr.f32.gmra.mrb[0].mxu0 %v113
    %v957 = vpop.f32.mrb[0].mxu0
    %v958 = vadd.f32 0.0, %v957
    %v959 = vpop.f32.mrb[0].mxu0
    %960 = vmatprep.mubr.f32.mxu0 0.0
    %961 = vmatmul.mubr.f32.gmra.mrb[0].mxu0 %v116
    %v962 = vpop.f32.mrb[0].mxu0
    %v963 = vadd.f32 0.0, %v962
    %v964 = vpop.f32.mrb[0].mxu0
    %965 = vmatprep.mubr.f32.mxu0 0.0
    %966 = vmatmul.mubr.f32.gmra.mrb[0].mxu0 %v119
    %v967 = vpop.f32.mrb[0].mxu0
    %v968 = vadd.f32 0.0, %v967
    %v969 = vpop.f32.mrb[0].mxu0
    %970 = vmatprep.mubr.f32.mxu0 0.0
    %971 = vmatmul.mubr.f32.gmra.mrb[0].mxu0 %v122
    %v972 = vpop.f32.mrb[0].mxu0
    %v973 = vadd.f32 0.0, %v972
    %v974 = vpop.f32.mrb[0].mxu0
    %975 = vmatprep.mubr.f32.mxu0 0.0
    %976 = vmatmul.mubr.f32.gmra.mrb[0].mxu0 %v125
    %v977 = vpop.f32.mrb[0].mxu0
    %v978 = vadd.f32 0.0, %v977
    %v979 = vpop.f32.mrb[0].mxu0
    %980 = vmatprep.mubr.f32.mxu0 0.0
    %981 = vmatmul.mubr.f32.gmra.mrb[0].mxu0 %v128
    %v982 = vpop.f32.mrb[0].mxu0
    %v983 = vadd.f32 0.0, %v982
    %v984 = vpop.f32.mrb[0].mxu0
    %985 = vmatprep.mubr.f32.mxu0 0.0
    %986 = vmatmul.mubr.f32.gmra.mrb[0].mxu0 %v131
    %v987 = vpop.f32.mrb[0].mxu0
    %v988 = vadd.f32 0.0, %v987
    %v989 = vpop.f32.mrb[0].mxu0
    %990 = vmatprep.mubr.f32.mxu0 0.0
    %991 = vmatmul.mubr.f32.gmra.mrb[0].mxu0 %v134
    %v992 = vpop.f32.mrb[0].mxu0
    %v993 = vadd.f32 0.0, %v992
    %v994 = vpop.f32.mrb[0].mxu0
    %995 = vmatprep.mubr.f32.mxu0 0.0
    %996 = vmatmul.mubr.f32.gmra.mrb[0].mxu0 %v137
    %v997 = vpop.f32.mrb[0].mxu0
    %v998 = vadd.f32 0.0, %v997
    %v999 = vpop.f32.mrb[0].mxu0
    %1000 = vmatprep.mubr.f32.mxu0 0.0
    %1001 = vmatmul.mubr.f32.gmra.mrb[0].mxu0 %v140
    %v1002 = vpop.f32.mrb[0].mxu0
    %v1003 = vadd.f32 0.0, %v1002
    %v1004 = vpop.f32.mrb[0].mxu0
    %1005 = vmatprep.mubr.f32.mxu0 0.0
    %1006 = vmatmul.mubr.f32.gmra.mrb[0].mxu0 %v143
    %v1007 = vpop.f32.mrb[0].mxu0
    %v1008 = vadd.f32 0.0, %v1007
    %v1009 = vpop.f32.mrb[0].mxu0
    %1010 = vmatprep.mubr.f32.mxu0 0.0
    %1011 = vmatmul.mubr.f32.gmra.mrb[0].mxu0 %v146
    %v1012 = vpop.f32.mrb[0].mxu0
    %v1013 = vadd.f32 0.0, %v1012
    %v1014 = vpop.f32.mrb[0].mxu0
    %1015 = vdwg.mxu0
    %v1017 = vsel %vm99, %v80, 0
    %1019 = vmatprep.subr.mxu0 0.0
    %1020 = vmatpush1.msra.mxu0 %v938
    %1021 = vmatprep.subr.mxu0 0.0
    %1022 = vmatpush1.msra.mxu0 %v943
    %1023 = vmatprep.subr.mxu0 0.0
    %1024 = vmatpush1.msra.mxu0 0.0
    %1025 = vmatprep.subr.mxu0 0.0
    %1026 = vmatpush1.msra.mxu0 0.0
    %1027 = vmatprep.subr.mxu0 0.0
    %1028 = vmatpush1.msra.mxu0 0.0
    %1029 = vmatprep.subr.mxu0 0.0
    %1030 = vmatpush1.msra.mxu0 0.0
    %1031 = vmatprep.subr.mxu0 0.0
    %1032 = vmatpush1.msra.mxu0 0.0
    %1033 = vmatprep.subr.mxu0 0.0
    %1034 = vmatpush1.msra.mxu0 0.0
    %1035 = vmatprep.subr.mxu0 0.0
    %1036 = vmatpush1.msra.mxu0 0.0
    %1037 = vmatprep.subr.mxu0 0.0
    %1038 = vmatpush1.msra.mxu0 0.0
    %1039 = vmatprep.subr.mxu0 0.0
    %1040 = vmatpush1.msra.mxu0 0.0
    %1041 = vmatprep.subr.mxu0 0.0
    %1042 = vmatpush1.msra.mxu0 0.0
    %1043 = vmatprep.subr.mxu0 0.0
    %1044 = vmatpush1.msra.mxu0 0.0
    %1045 = vmatprep.subr.mxu0 0.0
    %1046 = vmatpush1.msra.mxu0 0.0
    %1047 = vmatprep.subr.mxu0 0.0
    %1048 = vmatpush1.msra.mxu0 0.0
    %1049 = vmatprep.subr.mxu0 0.0
    %1050 = vmatpush1.msra.mxu0 0.0
    %1051 = vmatprep.subr.mxu0 0.0
    %1052 = vmatpush1.msra.mxu0 0.0
    %1053 = vmatprep.subr.mxu0 0.0
    %1054 = vmatpush1.msra.mxu0 0.0
    %1055 = vmatprep.subr.mxu0 0.0
    %1056 = vmatpush1.msra.mxu0 0.0
    %1057 = vmatprep.subr.mxu0 0.0
    %1058 = vmatpush1.msra.mxu0 0.0
    %1059 = vmatprep.subr.mxu0 0.0
    %1060 = vmatpush1.msra.mxu0 0.0
    %1061 = vmatprep.subr.mxu0 0.0
    %1062 = vmatpush1.msra.mxu0 0.0
    %1063 = vmatprep.subr.mxu0 0.0
    %1064 = vmatpush1.msra.mxu0 0.0
    %1065 = vmatprep.subr.mxu0 0.0
    %1066 = vmatpush1.msra.mxu0 0.0
    %1067 = vmatprep.subr.mxu0 0.0
    %1068 = vmatpush1.msra.mxu0 0.0
    %1069 = vmatprep.subr.mxu0 0.0
    %1070 = vmatpush1.msra.mxu0 0.0
    %1071 = vmatprep.subr.mxu0 0.0
    %1072 = vmatpush1.msra.mxu0 0.0
    %1073 = vmatprep.subr.mxu0 0.0
    %1074 = vmatpush1.msra.mxu0 0.0
    %1075 = vmatprep.subr.mxu0 0.0
    %1076 = vmatpush1.msra.mxu0 0.0
    %1077 = vmatprep.subr.mxu0 0.0
    %1078 = vmatpush1.msra.mxu0 0.0
    %1079 = vmatprep.subr.mxu0 0.0
    %1080 = vmatpush1.msra.mxu0 0.0
    %1081 = vmatprep.subr.mxu0 0.0
    %1082 = vmatpush1.msra.mxu0 0.0
    %1083 = vmatprep.mubr.f32.mxu0 0.0
    %1084 = vmatmul.mubr.f32.gmra.mrb[0].mxu0 %v1017
    %v1085 = vpop.f32.mrb[0].mxu0
    %v1086 = vadd.f32 0.0, %v1085
    %v1087 = vpop.f32.mrb[0].mxu0
    %1088 = vdwg.mxu0
    %1089 = vst [vmem:[#allocation11] sm:$0xf] %v1086
    %1090 = vmatprep.subr.mxu0 0.0
    %1091 = vmatpush1.msra.mxu0 %v948
    %1092 = vmatprep.subr.mxu0 0.0
    %1093 = vmatpush1.msra.mxu0 %v953
    %1094 = vmatprep.subr.mxu0 0.0
    %1095 = vmatpush1.msra.mxu0 0.0
    %1096 = vmatprep.subr.mxu0 0.0
    %1097 = vmatpush1.msra.mxu0 0.0
    %1098 = vmatprep.subr.mxu0 0.0
    %1099 = vmatpush1.msra.mxu0 0.0
    %1100 = vmatprep.subr.mxu0 0.0
    %1101 = vmatpush1.msra.mxu0 0.0
    %1102 = vmatprep.subr.mxu0 0.0
    %1103 = vmatpush1.msra.mxu0 0.0
    %1104 = vmatprep.subr.mxu0 0.0
    %1105 = vmatpush1.msra.mxu0 0.0
    %1106 = vmatprep.subr.mxu0 0.0
    %1107 = vmatpush1.msra.mxu0 0.0
    %1108 = vmatprep.subr.mxu0 0.0
    %1109 = vmatpush1.msra.mxu0 0.0
    %1110 = vmatprep.subr.mxu0 0.0
    %1111 = vmatpush1.msra.mxu0 0.0
    %1112 = vmatprep.subr.mxu0 0.0
    %1113 = vmatpush1.msra.mxu0 0.0
    %1114 = vmatprep.subr.mxu0 0.0
    %1115 = vmatpush1.msra.mxu0 0.0
    %1116 = vmatprep.subr.mxu0 0.0
    %1117 = vmatpush1.msra.mxu0 0.0
    %1118 = vmatprep.subr.mxu0 0.0
    %1119 = vmatpush1.msra.mxu0 0.0
    %1120 = vmatprep.subr.mxu0 0.0
    %1121 = vmatpush1.msra.mxu0 0.0
    %1122 = vmatprep.subr.mxu0 0.0
    %1123 = vmatpush1.msra.mxu0 0.0
    %1124 = vmatprep.subr.mxu0 0.0
    %1125 = vmatpush1.msra.mxu0 0.0
    %1126 = vmatprep.subr.mxu0 0.0
    %1127 = vmatpush1.msra.mxu0 0.0
    %1128 = vmatprep.subr.mxu0 0.0
    %1129 = vmatpush1.msra.mxu0 0.0
    %1130 = vmatprep.subr.mxu0 0.0
    %1131 = vmatpush1.msra.mxu0 0.0
    %1132 = vmatprep.subr.mxu0 0.0
    %1133 = vmatpush1.msra.mxu0 0.0
    %1134 = vmatprep.subr.mxu0 0.0
    %1135 = vmatpush1.msra.mxu0 0.0
    %1136 = vmatprep.subr.mxu0 0.0
    %1137 = vmatpush1.msra.mxu0 0.0
    %1138 = vmatprep.subr.mxu0 0.0
    %1139 = vmatpush1.msra.mxu0 0.0
    %1140 = vmatprep.subr.mxu0 0.0
    %1141 = vmatpush1.msra.mxu0 0.0
    %1142 = vmatprep.subr.mxu0 0.0
    %1143 = vmatpush1.msra.mxu0 0.0
    %1144 = vmatprep.subr.mxu0 0.0
    %1145 = vmatpush1.msra.mxu0 0.0
    %1146 = vmatprep.subr.mxu0 0.0
    %1147 = vmatpush1.msra.mxu0 0.0
    %1148 = vmatprep.subr.mxu0 0.0
    %1149 = vmatpush1.msra.mxu0 0.0
    %1150 = vmatprep.subr.mxu0 0.0
    %1151 = vmatpush1.msra.mxu0 0.0
    %1152 = vmatprep.subr.mxu0 0.0
    %1153 = vmatpush1.msra.mxu0 0.0
    %1154 = vmatprep.mubr.f32.mxu0 0.0
    %1155 = vmatmul.mubr.f32.gmra.mrb[0].mxu0 %v1017
    %v1156 = vpop.f32.mrb[0].mxu0
    %v1157 = vadd.f32 0.0, %v1156
    %v1158 = vpop.f32.mrb[0].mxu0
    %1159 = vdwg.mxu0
    %s1160 = scalar_lea.vmem [#allocation11], 4
    %1161 = vst [vmem:[%s1160] sm:$0xf] %v1157
    %1162 = vmatprep.subr.mxu0 0.0
    %1163 = vmatpush1.msra.mxu0 %v958
    %1164 = vmatprep.subr.mxu0 0.0
    %1165 = vmatpush1.msra.mxu0 %v963
    %1166 = vmatprep.subr.mxu0 0.0
    %1167 = vmatpush1.msra.mxu0 0.0
    %1168 = vmatprep.subr.mxu0 0.0
    %1169 = vmatpush1.msra.mxu0 0.0
    %1170 = vmatprep.subr.mxu0 0.0
    %1171 = vmatpush1.msra.mxu0 0.0
    %1172 = vmatprep.subr.mxu0 0.0
    %1173 = vmatpush1.msra.mxu0 0.0
    %1174 = vmatprep.subr.mxu0 0.0
    %1175 = vmatpush1.msra.mxu0 0.0
    %1176 = vmatprep.subr.mxu0 0.0
    %1177 = vmatpush1.msra.mxu0 0.0
    %1178 = vmatprep.subr.mxu0 0.0
    %1179 = vmatpush1.msra.mxu0 0.0
    %1180 = vmatprep.subr.mxu0 0.0
    %1181 = vmatpush1.msra.mxu0 0.0
    %1182 = vmatprep.subr.mxu0 0.0
    %1183 = vmatpush1.msra.mxu0 0.0
    %1184 = vmatprep.subr.mxu0 0.0
    %1185 = vmatpush1.msra.mxu0 0.0
    %1186 = vmatprep.subr.mxu0 0.0
    %1187 = vmatpush1.msra.mxu0 0.0
    %1188 = vmatprep.subr.mxu0 0.0
    %1189 = vmatpush1.msra.mxu0 0.0
    %1190 = vmatprep.subr.mxu0 0.0
    %1191 = vmatpush1.msra.mxu0 0.0
    %1192 = vmatprep.subr.mxu0 0.0
    %1193 = vmatpush1.msra.mxu0 0.0
    %1194 = vmatprep.subr.mxu0 0.0
    %1195 = vmatpush1.msra.mxu0 0.0
    %1196 = vmatprep.subr.mxu0 0.0
    %1197 = vmatpush1.msra.mxu0 0.0
    %1198 = vmatprep.subr.mxu0 0.0
    %1199 = vmatpush1.msra.mxu0 0.0
    %1200 = vmatprep.subr.mxu0 0.0
    %1201 = vmatpush1.msra.mxu0 0.0
    %1202 = vmatprep.subr.mxu0 0.0
    %1203 = vmatpush1.msra.mxu0 0.0
    %1204 = vmatprep.subr.mxu0 0.0
    %1205 = vmatpush1.msra.mxu0 0.0
    %1206 = vmatprep.subr.mxu0 0.0
    %1207 = vmatpush1.msra.mxu0 0.0
    %1208 = vmatprep.subr.mxu0 0.0
    %1209 = vmatpush1.msra.mxu0 0.0
    %1210 = vmatprep.subr.mxu0 0.0
    %1211 = vmatpush1.msra.mxu0 0.0
    %1212 = vmatprep.subr.mxu0 0.0
    %1213 = vmatpush1.msra.mxu0 0.0
    %1214 = vmatprep.subr.mxu0 0.0
    %1215 = vmatpush1.msra.mxu0 0.0
    %1216 = vmatprep.subr.mxu0 0.0
    %1217 = vmatpush1.msra.mxu0 0.0
    %1218 = vmatprep.subr.mxu0 0.0
    %1219 = vmatpush1.msra.mxu0 0.0
    %1220 = vmatprep.subr.mxu0 0.0
    %1221 = vmatpush1.msra.mxu0 0.0
    %1222 = vmatprep.subr.mxu0 0.0
    %1223 = vmatpush1.msra.mxu0 0.0
    %1224 = vmatprep.subr.mxu0 0.0
    %1225 = vmatpush1.msra.mxu0 0.0
    %1226 = vmatprep.mubr.f32.mxu0 0.0
    %1227 = vmatmul.mubr.f32.gmra.mrb[0].mxu0 %v1017
    %v1228 = vpop.f32.mrb[0].mxu0
    %v1229 = vadd.f32 0.0, %v1228
    %v1230 = vpop.f32.mrb[0].mxu0
    %1231 = vdwg.mxu0
    %s1232 = scalar_lea.vmem [#allocation11], 8
    %1233 = vst [vmem:[%s1232] sm:$0xf] %v1229
    %1234 = vmatprep.subr.mxu0 0.0
    %1235 = vmatpush1.msra.mxu0 %v968
    %1236 = vmatprep.subr.mxu0 0.0
    %1237 = vmatpush1.msra.mxu0 %v973
    %1238 = vmatprep.subr.mxu0 0.0
    %1239 = vmatpush1.msra.mxu0 0.0
    %1240 = vmatprep.subr.mxu0 0.0
    %1241 = vmatpush1.msra.mxu0 0.0
    %1242 = vmatprep.subr.mxu0 0.0
    %1243 = vmatpush1.msra.mxu0 0.0
    %1244 = vmatprep.subr.mxu0 0.0
    %1245 = vmatpush1.msra.mxu0 0.0
    %1246 = vmatprep.subr.mxu0 0.0
    %1247 = vmatpush1.msra.mxu0 0.0
    %1248 = vmatprep.subr.mxu0 0.0
    %1249 = vmatpush1.msra.mxu0 0.0
    %1250 = vmatprep.subr.mxu0 0.0
    %1251 = vmatpush1.msra.mxu0 0.0
    %1252 = vmatprep.subr.mxu0 0.0
    %1253 = vmatpush1.msra.mxu0 0.0
    %1254 = vmatprep.subr.mxu0 0.0
    %1255 = vmatpush1.msra.mxu0 0.0
    %1256 = vmatprep.subr.mxu0 0.0
    %1257 = vmatpush1.msra.mxu0 0.0
    %1258 = vmatprep.subr.mxu0 0.0
    %1259 = vmatpush1.msra.mxu0 0.0
    %1260 = vmatprep.subr.mxu0 0.0
    %1261 = vmatpush1.msra.mxu0 0.0
    %1262 = vmatprep.subr.mxu0 0.0
    %1263 = vmatpush1.msra.mxu0 0.0
    %1264 = vmatprep.subr.mxu0 0.0
    %1265 = vmatpush1.msra.mxu0 0.0
    %1266 = vmatprep.subr.mxu0 0.0
    %1267 = vmatpush1.msra.mxu0 0.0
    %1268 = vmatprep.subr.mxu0 0.0
    %1269 = vmatpush1.msra.mxu0 0.0
    %1270 = vmatprep.subr.mxu0 0.0
    %1271 = vmatpush1.msra.mxu0 0.0
    %1272 = vmatprep.subr.mxu0 0.0
    %1273 = vmatpush1.msra.mxu0 0.0
    %1274 = vmatprep.subr.mxu0 0.0
    %1275 = vmatpush1.msra.mxu0 0.0
    %1276 = vmatprep.subr.mxu0 0.0
    %1277 = vmatpush1.msra.mxu0 0.0
    %1278 = vmatprep.subr.mxu0 0.0
    %1279 = vmatpush1.msra.mxu0 0.0
    %1280 = vmatprep.subr.mxu0 0.0
    %1281 = vmatpush1.msra.mxu0 0.0
    %1282 = vmatprep.subr.mxu0 0.0
    %1283 = vmatpush1.msra.mxu0 0.0
    %1284 = vmatprep.subr.mxu0 0.0
    %1285 = vmatpush1.msra.mxu0 0.0
    %1286 = vmatprep.subr.mxu0 0.0
    %1287 = vmatpush1.msra.mxu0 0.0
    %1288 = vmatprep.subr.mxu0 0.0
    %1289 = vmatpush1.msra.mxu0 0.0
    %1290 = vmatprep.subr.mxu0 0.0
    %1291 = vmatpush1.msra.mxu0 0.0
    %1292 = vmatprep.subr.mxu0 0.0
    %1293 = vmatpush1.msra.mxu0 0.0
    %1294 = vmatprep.subr.mxu0 0.0
    %1295 = vmatpush1.msra.mxu0 0.0
    %1296 = vmatprep.subr.mxu0 0.0
    %1297 = vmatpush1.msra.mxu0 0.0
    %1298 = vmatprep.mubr.f32.mxu0 0.0
    %1299 = vmatmul.mubr.f32.gmra.mrb[0].mxu0 %v1017
    %v1300 = vpop.f32.mrb[0].mxu0
    %v1301 = vadd.f32 0.0, %v1300
    %v1302 = vpop.f32.mrb[0].mxu0
    %1303 = vdwg.mxu0
    %s1304 = scalar_lea.vmem [#allocation11], 12
    %1305 = vst [vmem:[%s1304] sm:$0xf] %v1301
    %1306 = vmatprep.subr.mxu0 0.0
    %1307 = vmatpush1.msra.mxu0 %v978
    %1308 = vmatprep.subr.mxu0 0.0
    %1309 = vmatpush1.msra.mxu0 %v983
    %1310 = vmatprep.subr.mxu0 0.0
    %1311 = vmatpush1.msra.mxu0 0.0
    %1312 = vmatprep.subr.mxu0 0.0
    %1313 = vmatpush1.msra.mxu0 0.0
    %1314 = vmatprep.subr.mxu0 0.0
    %1315 = vmatpush1.msra.mxu0 0.0
    %1316 = vmatprep.subr.mxu0 0.0
    %1317 = vmatpush1.msra.mxu0 0.0
    %1318 = vmatprep.subr.mxu0 0.0
    %1319 = vmatpush1.msra.mxu0 0.0
    %1320 = vmatprep.subr.mxu0 0.0
    %1321 = vmatpush1.msra.mxu0 0.0
    %1322 = vmatprep.subr.mxu0 0.0
    %1323 = vmatpush1.msra.mxu0 0.0
    %1324 = vmatprep.subr.mxu0 0.0
    %1325 = vmatpush1.msra.mxu0 0.0
    %1326 = vmatprep.subr.mxu0 0.0
    %1327 = vmatpush1.msra.mxu0 0.0
    %1328 = vmatprep.subr.mxu0 0.0
    %1329 = vmatpush1.msra.mxu0 0.0
    %1330 = vmatprep.subr.mxu0 0.0
    %1331 = vmatpush1.msra.mxu0 0.0
    %1332 = vmatprep.subr.mxu0 0.0
    %1333 = vmatpush1.msra.mxu0 0.0
    %1334 = vmatprep.subr.mxu0 0.0
    %1335 = vmatpush1.msra.mxu0 0.0
    %1336 = vmatprep.subr.mxu0 0.0
    %1337 = vmatpush1.msra.mxu0 0.0
    %1338 = vmatprep.subr.mxu0 0.0
    %1339 = vmatpush1.msra.mxu0 0.0
    %1340 = vmatprep.subr.mxu0 0.0
    %1341 = vmatpush1.msra.mxu0 0.0
    %1342 = vmatprep.subr.mxu0 0.0
    %1343 = vmatpush1.msra.mxu0 0.0
    %1344 = vmatprep.subr.mxu0 0.0
    %1345 = vmatpush1.msra.mxu0 0.0
    %1346 = vmatprep.subr.mxu0 0.0
    %1347 = vmatpush1.msra.mxu0 0.0
    %1348 = vmatprep.subr.mxu0 0.0
    %1349 = vmatpush1.msra.mxu0 0.0
    %1350 = vmatprep.subr.mxu0 0.0
    %1351 = vmatpush1.msra.mxu0 0.0
    %1352 = vmatprep.subr.mxu0 0.0
    %1353 = vmatpush1.msra.mxu0 0.0
    %1354 = vmatprep.subr.mxu0 0.0
    %1355 = vmatpush1.msra.mxu0 0.0
    %1356 = vmatprep.subr.mxu0 0.0
    %1357 = vmatpush1.msra.mxu0 0.0
    %1358 = vmatprep.subr.mxu0 0.0
    %1359 = vmatpush1.msra.mxu0 0.0
    %1360 = vmatprep.subr.mxu0 0.0
    %1361 = vmatpush1.msra.mxu0 0.0
    %1362 = vmatprep.subr.mxu0 0.0
    %1363 = vmatpush1.msra.mxu0 0.0
    %1364 = vmatprep.subr.mxu0 0.0
    %1365 = vmatpush1.msra.mxu0 0.0
    %1366 = vmatprep.subr.mxu0 0.0
    %1367 = vmatpush1.msra.mxu0 0.0
    %1368 = vmatprep.subr.mxu0 0.0
    %1369 = vmatpush1.msra.mxu0 0.0
    %1370 = vmatprep.mubr.f32.mxu0 0.0
    %1371 = vmatmul.mubr.f32.gmra.mrb[0].mxu0 %v1017
    %v1372 = vpop.f32.mrb[0].mxu0
    %v1373 = vadd.f32 0.0, %v1372
    %v1374 = vpop.f32.mrb[0].mxu0
    %1375 = vdwg.mxu0
    %s1376 = scalar_lea.vmem [#allocation11], 16
    %1377 = vst [vmem:[%s1376] sm:$0xf] %v1373
    %1378 = vmatprep.subr.mxu0 0.0
    %1379 = vmatpush1.msra.mxu0 %v988
    %1380 = vmatprep.subr.mxu0 0.0
    %1381 = vmatpush1.msra.mxu0 %v993
    %1382 = vmatprep.subr.mxu0 0.0
    %1383 = vmatpush1.msra.mxu0 0.0
    %1384 = vmatprep.subr.mxu0 0.0
    %1385 = vmatpush1.msra.mxu0 0.0
    %1386 = vmatprep.subr.mxu0 0.0
    %1387 = vmatpush1.msra.mxu0 0.0
    %1388 = vmatprep.subr.mxu0 0.0
    %1389 = vmatpush1.msra.mxu0 0.0
    %1390 = vmatprep.subr.mxu0 0.0
    %1391 = vmatpush1.msra.mxu0 0.0
    %1392 = vmatprep.subr.mxu0 0.0
    %1393 = vmatpush1.msra.mxu0 0.0
    %1394 = vmatprep.subr.mxu0 0.0
    %1395 = vmatpush1.msra.mxu0 0.0
    %1396 = vmatprep.subr.mxu0 0.0
    %1397 = vmatpush1.msra.mxu0 0.0
    %1398 = vmatprep.subr.mxu0 0.0
    %1399 = vmatpush1.msra.mxu0 0.0
    %1400 = vmatprep.subr.mxu0 0.0
    %1401 = vmatpush1.msra.mxu0 0.0
    %1402 = vmatprep.subr.mxu0 0.0
    %1403 = vmatpush1.msra.mxu0 0.0
    %1404 = vmatprep.subr.mxu0 0.0
    %1405 = vmatpush1.msra.mxu0 0.0
    %1406 = vmatprep.subr.mxu0 0.0
    %1407 = vmatpush1.msra.mxu0 0.0
    %1408 = vmatprep.subr.mxu0 0.0
    %1409 = vmatpush1.msra.mxu0 0.0
    %1410 = vmatprep.subr.mxu0 0.0
    %1411 = vmatpush1.msra.mxu0 0.0
    %1412 = vmatprep.subr.mxu0 0.0
    %1413 = vmatpush1.msra.mxu0 0.0
    %1414 = vmatprep.subr.mxu0 0.0
    %1415 = vmatpush1.msra.mxu0 0.0
    %1416 = vmatprep.subr.mxu0 0.0
    %1417 = vmatpush1.msra.mxu0 0.0
    %1418 = vmatprep.subr.mxu0 0.0
    %1419 = vmatpush1.msra.mxu0 0.0
    %1420 = vmatprep.subr.mxu0 0.0
    %1421 = vmatpush1.msra.mxu0 0.0
    %1422 = vmatprep.subr.mxu0 0.0
    %1423 = vmatpush1.msra.mxu0 0.0
    %1424 = vmatprep.subr.mxu0 0.0
    %1425 = vmatpush1.msra.mxu0 0.0
    %1426 = vmatprep.subr.mxu0 0.0
    %1427 = vmatpush1.msra.mxu0 0.0
    %1428 = vmatprep.subr.mxu0 0.0
    %1429 = vmatpush1.msra.mxu0 0.0
    %1430 = vmatprep.subr.mxu0 0.0
    %1431 = vmatpush1.msra.mxu0 0.0
    %1432 = vmatprep.subr.mxu0 0.0
    %1433 = vmatpush1.msra.mxu0 0.0
    %1434 = vmatprep.subr.mxu0 0.0
    %1435 = vmatpush1.msra.mxu0 0.0
    %1436 = vmatprep.subr.mxu0 0.0
    %1437 = vmatpush1.msra.mxu0 0.0
    %1438 = vmatprep.subr.mxu0 0.0
    %1439 = vmatpush1.msra.mxu0 0.0
    %1440 = vmatprep.subr.mxu0 0.0
    %1441 = vmatpush1.msra.mxu0 0.0
    %1442 = vmatprep.mubr.f32.mxu0 0.0
    %1443 = vmatmul.mubr.f32.gmra.mrb[0].mxu0 %v1017
    %v1444 = vpop.f32.mrb[0].mxu0
    %v1445 = vadd.f32 0.0, %v1444
    %v1446 = vpop.f32.mrb[0].mxu0
    %1447 = vdwg.mxu0
    %s1448 = scalar_lea.vmem [#allocation11], 20
    %1449 = vst [vmem:[%s1448] sm:$0xf] %v1445
    %1450 = vmatprep.subr.mxu0 0.0
    %1451 = vmatpush1.msra.mxu0 %v998
    %1452 = vmatprep.subr.mxu0 0.0
    %1453 = vmatpush1.msra.mxu0 %v1003
    %1454 = vmatprep.subr.mxu0 0.0
    %1455 = vmatpush1.msra.mxu0 0.0
    %1456 = vmatprep.subr.mxu0 0.0
    %1457 = vmatpush1.msra.mxu0 0.0
    %1458 = vmatprep.subr.mxu0 0.0
    %1459 = vmatpush1.msra.mxu0 0.0
    %1460 = vmatprep.subr.mxu0 0.0
    %1461 = vmatpush1.msra.mxu0 0.0
    %1462 = vmatprep.subr.mxu0 0.0
    %1463 = vmatpush1.msra.mxu0 0.0
    %1464 = vmatprep.subr.mxu0 0.0
    %1465 = vmatpush1.msra.mxu0 0.0
    %1466 = vmatprep.subr.mxu0 0.0
    %1467 = vmatpush1.msra.mxu0 0.0
    %1468 = vmatprep.subr.mxu0 0.0
    %1469 = vmatpush1.msra.mxu0 0.0
    %1470 = vmatprep.subr.mxu0 0.0
    %1471 = vmatpush1.msra.mxu0 0.0
    %1472 = vmatprep.subr.mxu0 0.0
    %1473 = vmatpush1.msra.mxu0 0.0
    %1474 = vmatprep.subr.mxu0 0.0
    %1475 = vmatpush1.msra.mxu0 0.0
    %1476 = vmatprep.subr.mxu0 0.0
    %1477 = vmatpush1.msra.mxu0 0.0
    %1478 = vmatprep.subr.mxu0 0.0
    %1479 = vmatpush1.msra.mxu0 0.0
    %1480 = vmatprep.subr.mxu0 0.0
    %1481 = vmatpush1.msra.mxu0 0.0
    %1482 = vmatprep.subr.mxu0 0.0
    %1483 = vmatpush1.msra.mxu0 0.0
    %1484 = vmatprep.subr.mxu0 0.0
    %1485 = vmatpush1.msra.mxu0 0.0
    %1486 = vmatprep.subr.mxu0 0.0
    %1487 = vmatpush1.msra.mxu0 0.0
    %1488 = vmatprep.subr.mxu0 0.0
    %1489 = vmatpush1.msra.mxu0 0.0
    %1490 = vmatprep.subr.mxu0 0.0
    %1491 = vmatpush1.msra.mxu0 0.0
    %1492 = vmatprep.subr.mxu0 0.0
    %1493 = vmatpush1.msra.mxu0 0.0
    %1494 = vmatprep.subr.mxu0 0.0
    %1495 = vmatpush1.msra.mxu0 0.0
    %1496 = vmatprep.subr.mxu0 0.0
    %1497 = vmatpush1.msra.mxu0 0.0
    %1498 = vmatprep.subr.mxu0 0.0
    %1499 = vmatpush1.msra.mxu0 0.0
    %1500 = vmatprep.subr.mxu0 0.0
    %1501 = vmatpush1.msra.mxu0 0.0
    %1502 = vmatprep.subr.mxu0 0.0
    %1503 = vmatpush1.msra.mxu0 0.0
    %1504 = vmatprep.subr.mxu0 0.0
    %1505 = vmatpush1.msra.mxu0 0.0
    %1506 = vmatprep.subr.mxu0 0.0
    %1507 = vmatpush1.msra.mxu0 0.0
    %1508 = vmatprep.subr.mxu0 0.0
    %1509 = vmatpush1.msra.mxu0 0.0
    %1510 = vmatprep.subr.mxu0 0.0
    %1511 = vmatpush1.msra.mxu0 0.0
    %1512 = vmatprep.subr.mxu0 0.0
    %1513 = vmatpush1.msra.mxu0 0.0
    %1514 = vmatprep.mubr.f32.mxu0 0.0
    %1515 = vmatmul.mubr.f32.gmra.mrb[0].mxu0 %v1017
    %v1516 = vpop.f32.mrb[0].mxu0
    %v1517 = vadd.f32 0.0, %v1516
    %v1518 = vpop.f32.mrb[0].mxu0
    %1519 = vdwg.mxu0
    %s1520 = scalar_lea.vmem [#allocation11], 24
    %1521 = vst [vmem:[%s1520] sm:$0xf] %v1517
    %1522 = vmatprep.subr.mxu0 0.0
    %1523 = vmatpush1.msra.mxu0 %v1008
    %1524 = vmatprep.subr.mxu0 0.0
    %1525 = vmatpush1.msra.mxu0 %v1013
    %1526 = vmatprep.subr.mxu0 0.0
    %1527 = vmatpush1.msra.mxu0 0.0
    %1528 = vmatprep.subr.mxu0 0.0
    %1529 = vmatpush1.msra.mxu0 0.0
    %1530 = vmatprep.subr.mxu0 0.0
    %1531 = vmatpush1.msra.mxu0 0.0
    %1532 = vmatprep.subr.mxu0 0.0
    %1533 = vmatpush1.msra.mxu0 0.0
    %1534 = vmatprep.subr.mxu0 0.0
    %1535 = vmatpush1.msra.mxu0 0.0
    %1536 = vmatprep.subr.mxu0 0.0
    %1537 = vmatpush1.msra.mxu0 0.0
    %1538 = vmatprep.subr.mxu0 0.0
    %1539 = vmatpush1.msra.mxu0 0.0
    %1540 = vmatprep.subr.mxu0 0.0
    %1541 = vmatpush1.msra.mxu0 0.0
    %1542 = vmatprep.subr.mxu0 0.0
    %1543 = vmatpush1.msra.mxu0 0.0
    %1544 = vmatprep.subr.mxu0 0.0
    %1545 = vmatpush1.msra.mxu0 0.0
    %1546 = vmatprep.subr.mxu0 0.0
    %1547 = vmatpush1.msra.mxu0 0.0
    %1548 = vmatprep.subr.mxu0 0.0
    %1549 = vmatpush1.msra.mxu0 0.0
    %1550 = vmatprep.subr.mxu0 0.0
    %1551 = vmatpush1.msra.mxu0 0.0
    %1552 = vmatprep.subr.mxu0 0.0
    %1553 = vmatpush1.msra.mxu0 0.0
    %1554 = vmatprep.subr.mxu0 0.0
    %1555 = vmatpush1.msra.mxu0 0.0
    %1556 = vmatprep.subr.mxu0 0.0
    %1557 = vmatpush1.msra.mxu0 0.0
    %1558 = vmatprep.subr.mxu0 0.0
    %1559 = vmatpush1.msra.mxu0 0.0
    %1560 = vmatprep.subr.mxu0 0.0
    %1561 = vmatpush1.msra.mxu0 0.0
    %1562 = vmatprep.subr.mxu0 0.0
    %1563 = vmatpush1.msra.mxu0 0.0
    %1564 = vmatprep.subr.mxu0 0.0
    %1565 = vmatpush1.msra.mxu0 0.0
    %1566 = vmatprep.subr.mxu0 0.0
    %1567 = vmatpush1.msra.mxu0 0.0
    %1568 = vmatprep.subr.mxu0 0.0
    %1569 = vmatpush1.msra.mxu0 0.0
    %1570 = vmatprep.subr.mxu0 0.0
    %1571 = vmatpush1.msra.mxu0 0.0
    %1572 = vmatprep.subr.mxu0 0.0
    %1573 = vmatpush1.msra.mxu0 0.0
    %1574 = vmatprep.subr.mxu0 0.0
    %1575 = vmatpush1.msra.mxu0 0.0
    %1576 = vmatprep.subr.mxu0 0.0
    %1577 = vmatpush1.msra.mxu0 0.0
    %1578 = vmatprep.subr.mxu0 0.0
    %1579 = vmatpush1.msra.mxu0 0.0
    %1580 = vmatprep.subr.mxu0 0.0
    %1581 = vmatpush1.msra.mxu0 0.0
    %1582 = vmatprep.subr.mxu0 0.0
    %1583 = vmatpush1.msra.mxu0 0.0
    %1584 = vmatprep.subr.mxu0 0.0
    %1585 = vmatpush1.msra.mxu0 0.0
    %1586 = vmatprep.mubr.f32.mxu0 0.0
    %1587 = vmatmul.mubr.f32.gmra.mrb[0].mxu0 %v1017
    %v1588 = vpop.f32.mrb[0].mxu0
    %v1589 = vadd.f32 0.0, %v1588
    %v1590 = vpop.f32.mrb[0].mxu0
    %1591 = vdwg.mxu0
    %s1592 = scalar_lea.vmem [#allocation11], 28
    %1593 = vst [vmem:[%s1592] sm:$0xf] %v1589
    // Predicated region
    $region38: #{tpu_custom_call.1} parent=1 // pred_check
      _
    $region39: #{tpu_custom_call.1} parent=1 // pred_check_branch
      %1595 = sbr.rel (0) target = $region41
    $region40: #{tpu_custom_call.1} parent=1 // pred_region
      %s1597 = ssub.s32 1024, 1024
      %1598 = vsyncadd [#allocation4], %s1597
      %s1599 = sshll.u32 [#allocation10], 4
      %s1600 = int_to_ptr.vmem [resolvable:$true] %s1599
      %1605 = dma.vmem_to_hbm [thread:$0]  %s1600, 1024, %s5, [#allocation4], 128, 128, 8
    $region41: #{tpu_custom_call.1} parent=1 // pred_fallthru
      _
    // Predicated region
    $region42: #{tpu_custom_call.1} parent=1 // pred_check
      _
    $region43: #{tpu_custom_call.1} parent=1 // pred_check_branch
      %1607 = sbr.rel (0) target = $region45
    $region44: #{tpu_custom_call.1} parent=1 // pred_region
      %s1609 = ssub.s32 512, 512
      %1610 = vsyncadd [#allocation12], %s1609
      %s1611 = sshll.u32 [#allocation11], 4
      %s1612 = int_to_ptr.vmem [resolvable:$true] %s1611
      %1617 = dma.vmem_to_hbm [thread:$0]  %s1612, 512, %s6, [#allocation12], 64, 64, 4
    $region45: #{tpu_custom_call.1} parent=1 // pred_fallthru
      _
    // Predicated region
    $region46: #{tpu_custom_call.1} parent=1 // pred_check
      _
    $region47: #{tpu_custom_call.1} parent=1 // pred_check_branch
      %1619 = sbr.rel (0) target = $region49
    $region48: #{tpu_custom_call.1} parent=1 // pred_region
      %1620 = dma.done [#allocation4], 1024
    $region49: #{tpu_custom_call.1} parent=1 // pred_fallthru
      _
    // Predicated region
    $region50: #{tpu_custom_call.1} parent=1 // pred_check
      _
    $region51: #{tpu_custom_call.1} parent=1 // pred_check_branch
      %1622 = sbr.rel (0) target = $region53
    $region52: #{tpu_custom_call.1} parent=1 // pred_region
      %1623 = dma.done [#allocation12], 512
    $region53: #{tpu_custom_call.1} parent=1 // pred_fallthru
      _
    %1624 = vsyncpa [#allocation3], 1
    %1625 = vsyncpa [#allocation6], 1
    %1626 = vsyncpa [#allocation9], 1
    %1627 = vsyncpa [#allocation4], 1
    %1628 = vsyncpa [#allocation12], 1

</llo_original>
